<compile_context>
chip_gen: v7x
topology: tpu7x:2x2x1
jax: 0.10.0
libtpu: 0.0.40
codegen_flags: <defaults>
</compile_context>

<pallas_src>
import functools

import jax
import jax.numpy as jnp
from jax import lax
from jax.experimental import pallas as pl
from jax.experimental.pallas import tpu as pltpu

# ---- Model config (matches NMRGNN defaults, hidden scaled down to 32) -------
NUM_NODE_FEATURES = 2
NUM_EQ_CLASSES = 5
EQ_EMB_DIM = 8
HIDDEN_DIM = 32
NUM_LAYERS = 3
IN_DIM = NUM_NODE_FEATURES + EQ_EMB_DIM          # 10
BN_EPS = 1e-5
ROW_PAD = 128        # node-count padding multiple (lanes of the output block)
OUT_SUBLANES = 8     # output rows; row 0 holds the real result

assert HIDDEN_DIM >= IN_DIM, "layer-0 weight padding assumes hidden >= in_dim"


# ------------------------------ Pallas kernel --------------------------------
def nmrgnn_kernel(scal_ref, x_ref, adj_ref, wstk_ref, vecs_ref, wf8_ref,
                  out_ref, *, n_valid):
    n_pad = adj_ref.shape[0]
    H = HIDDEN_DIM

    adj = adj_ref[...]                       # bf16 [N_pad, N_pad] — loaded once, reused 3x
    h32 = x_ref[...]                         # f32  [N_pad, H] (feature zero-padded)
    h16 = h32.astype(jnp.bfloat16)           # bf16 carry for the MXU

    inv_n = jnp.float32(1.0 / n_valid)
    # Row-validity mask (1, N_pad): keeps padded rows out of the BatchNorm stats.
    col_ids = lax.broadcasted_iota(jnp.int32, (1, n_pad), 1)
    mask_row = (col_ids < n_valid).astype(jnp.float32)

    for l in range(NUM_LAYERS):
        eps = scal_ref[l]                                            # SMEM scalar
        # GINConv aggregation on the MXU (bf16 operands, f32 accumulate;
        # adjacency counts are exact in bf16).
        agg = jnp.dot(adj, h16, preferred_element_type=jnp.float32)
        z = (1.0 + eps) * h32 + agg                                  # f32 elementwise

        w1 = wstk_ref[2 * l]                                         # bf16 (H, H)
        w2 = wstk_ref[2 * l + 1]                                     # bf16 (H, H)
        v = vecs_ref[l]                                              # f32 (8, H)
        b1, b2, g, be = v[0:1], v[1:2], v[2:3], v[3:4]

        # MLP: Linear -> ReLU -> Linear -> ReLU (bf16 MXU operands, f32 accum).
        z = jnp.maximum(
            jnp.dot(z.astype(jnp.bfloat16), w1,
                    preferred_element_type=jnp.float32) + b1, 0.0)
        z = jnp.maximum(
            jnp.dot(z.astype(jnp.bfloat16), w2,
                    preferred_element_type=jnp.float32) + b2, 0.0)

        # BatchNorm1d (training-mode batch stats over valid rows only).
        # Single fused masked reduction matmul: sum(z) and sum(z*z) in one push.
        moments = jnp.dot(mask_row, jnp.concatenate([z, z * z], axis=1),
                          preferred_element_type=jnp.float32)        # (1, 2H)
        mean = moments[:, :H] * inv_n
        var = jnp.maximum(moments[:, H:] * inv_n - mean * mean, 0.0)
        scale = g * lax.rsqrt(var + BN_EPS)
        shift = be - mean * scale
        # BN + ReLU in two VALU ops per element.
        h32 = jnp.maximum(z * scale + shift, 0.0)
        h16 = h32.astype(jnp.bfloat16)

    # Final Linear(H -> 1) as a transposed lane-dense block: (8, N_pad) f32,
    # real result in row 0 (nodes on lanes -> 4 B/node write, unmasked vst).
    proj = jnp.dot(wf8_ref[...], h32.T, preferred_element_type=jnp.float32)
    out_ref[...] = proj + scal_ref[NUM_LAYERS]


# ------------------------------ JAX wrapper -----------------------------------
def init_params(key):
    params = {}
    k = jax.random.split(key, 4 * NUM_LAYERS + 3)
    ki = 0
    params["eq_table"] = 0.1 * jax.random.normal(
        k[ki], (NUM_EQ_CLASSES, EQ_EMB_DIM), jnp.float32); ki += 1
    # train_eps=True -> eps is a learned scalar per layer (deterministic values)
    params["eps"] = jnp.array([0.1, -0.05, 0.2], dtype=jnp.float32)
    in_dim = IN_DIM
    for l in range(NUM_LAYERS):
        params[f"w1_{l}"] = 0.1 * jax.random.normal(
            k[ki], (in_dim, HIDDEN_DIM), jnp.float32); ki += 1
        params[f"b1_{l}"] = 0.01 * jax.random.normal(
            k[ki], (1, HIDDEN_DIM), jnp.float32); ki += 1
        params[f"w2_{l}"] = 0.1 * jax.random.normal(
            k[ki], (HIDDEN_DIM, HIDDEN_DIM), jnp.float32); ki += 1
        params[f"b2_{l}"] = 0.01 * jax.random.normal(
            k[ki], (1, HIDDEN_DIM), jnp.float32); ki += 1
        # BatchNorm affine params (gamma, beta)
        params[f"gamma_{l}"] = jnp.ones((1, HIDDEN_DIM), jnp.float32) \
            + 0.05 * jnp.arange(HIDDEN_DIM, dtype=jnp.float32)[None, :] / HIDDEN_DIM
        params[f"beta_{l}"] = 0.02 * jnp.arange(
            HIDDEN_DIM, dtype=jnp.float32)[None, :] / HIDDEN_DIM
        in_dim = HIDDEN_DIM
    params["wf"] = 0.1 * jax.random.normal(
        k[ki], (HIDDEN_DIM, 1), jnp.float32); ki += 1
    params["bf"] = 0.01 * jnp.ones((1, 1), jnp.float32)
    return params


def _round_up(n, m):
    return ((n + m - 1) // m) * m


def _pack_params(params):
    """Pack the ~22 tiny per-layer operands into 4 stacked call operands."""
    H = HIDDEN_DIM
    # Layer-0 first weight zero-padded on its input rows to (H, H) so the
    # weight stack has uniform shape; padded x columns are zero so results match.
    w1_0 = jnp.zeros((H, H), jnp.float32).at[:IN_DIM, :].set(params["w1_0"])
    wstk = jnp.stack(
        [w1_0, params["w2_0"],
         params["w1_1"], params["w2_1"],
         params["w1_2"], params["w2_2"]], axis=0).astype(jnp.bfloat16)  # (6,H,H)
    vecs = jnp.zeros((NUM_LAYERS, 8, H), jnp.float32)                   # (3,8,H)
    for l in range(NUM_LAYERS):
        vecs = vecs.at[l, 0].set(params[f"b1_{l}"][0])
        vecs = vecs.at[l, 1].set(params[f"b2_{l}"][0])
        vecs = vecs.at[l, 2].set(params[f"gamma_{l}"][0])
        vecs = vecs.at[l, 3].set(params[f"beta_{l}"][0])
    wf8 = jnp.zeros((8, H), jnp.float32).at[0].set(params["wf"][:, 0])  # (8,H)
    scal = jnp.concatenate([params["eps"], params["bf"].reshape(-1)])   # (4,)
    return scal, wstk, vecs, wf8


def nmrgnn_forward(x, eq_labels, edge_index, params):
    N = x.shape[0]
    if N == 0:                                    # empty-graph guard
        return jnp.zeros((0,), jnp.float32)
    n_pad = _round_up(max(N, ROW_PAD), ROW_PAD)
    E = edge_index.shape[1]
    H = HIDDEN_DIM

    # Glue: embedding lookup + concat + row/feature zero-padding.
    eq_emb = params["eq_table"][eq_labels]                            # [N, EQ_EMB_DIM]
    x_in = jnp.concatenate([x.astype(jnp.float32), eq_emb], axis=-1)  # [N, IN_DIM]
    x_in = jnp.pad(x_in, ((0, n_pad - N), (0, H - IN_DIM)))           # [N_pad, H]

    # Dense adjacency built directly in bf16 (exact for edge counts <= 256):
    # never materializes an N^2 f32 buffer in HBM.
    # TODO(synk): at large N, build adjacency row tiles in-kernel from a
    # scalar-prefetched edge list (PrefetchScalarGridSpec) instead.
    adj = jnp.zeros((n_pad, n_pad), jnp.bfloat16)
    adj = adj.at[edge_index[1], edge_index[0]].add(jnp.ones((E,), jnp.bfloat16))

    scal, wstk, vecs, wf8 = _pack_params(params)

    smem = pl.BlockSpec(memory_space=pltpu.MemorySpace.SMEM)
    vmem = pl.BlockSpec(memory_space=pltpu.MemorySpace.VMEM)

    # Advisory cost estimate (helps XLA schedule the call vs. the glue).
    flops = 0
    for _ in range(NUM_LAYERS):
        flops += 2 * n_pad * n_pad * H            # aggregation
        flops += 2 * 2 * n_pad * H * H            # MLP linears
        flops += 2 * n_pad * 2 * H                # fused BN reduction matmul
    flops += 2 * OUT_SUBLANES * H * n_pad         # final projection
    bytes_accessed = int(
        scal.size * 4 + x_in.size * 4 + adj.size * 2 + wstk.size * 2
        + vecs.size * 4 + wf8.size * 4 + OUT_SUBLANES * n_pad * 4)
    cost = pl.CostEstimate(flops=int(flops),
                           transcendentals=NUM_LAYERS * H,
                           bytes_accessed=bytes_accessed)

    out = pl.pallas_call(
        functools.partial(nmrgnn_kernel, n_valid=N),
        out_shape=jax.ShapeDtypeStruct((OUT_SUBLANES, n_pad), jnp.float32),
        in_specs=[smem, vmem, vmem, vmem, vmem, vmem],
        out_specs=vmem,
        compiler_params=pltpu.CompilerParams(
            # Fits v7x's 32 MiB scoped / 64 MiB physical VMEM.
            # TODO(synk): raise toward ~100 MiB on v5e/v6e for mid-size graphs
            # so the bf16 adjacency stays VMEM-resident across all 3 layers.
            vmem_limit_bytes=32 * 1024 * 1024),
        cost_estimate=cost,
    )(scal, x_in, adj, wstk, vecs, wf8)
    # TODO(synk): batch multiple graphs per pallas_call and add a row-tiled
    # "parallel" grid (two-pass BN) for graphs whose adjacency exceeds VMEM.
    return out[0, :N]                                                 # .squeeze(-1)


# --------------------------- Pure-JAX references -------------------------------
def nmrgnn_reference_mirror(x, eq_labels, edge_index, params):
    """Mirrors the kernel's mixed precision (bf16 MXU operands / bf16 h carry,
    f32 elementwise and BN stats) for a tight correctness check."""
    bf = jnp.bfloat16
    N = x.shape[0]
    eq_emb = params["eq_table"][eq_labels]
    h32 = jnp.concatenate([x.astype(jnp.float32), eq_emb], axis=-1)
    adj = jnp.zeros((N, N), jnp.float32).at[
        edge_index[1], edge_index[0]].add(1.0).astype(bf)
    h16 = h32.astype(bf)
    for l in range(NUM_LAYERS):
        eps = params["eps"][l]
        agg = jnp.dot(adj, h16, preferred_element_type=jnp.float32)
        z = (1.0 + eps) * h32 + agg
        z = jnp.maximum(
            jnp.dot(z.astype(bf), params[f"w1_{l}"].astype(bf),
                    preferred_element_type=jnp.float32) + params[f"b1_{l}"], 0.0)
        z = jnp.maximum(
            jnp.dot(z.astype(bf), params[f"w2_{l}"].astype(bf),
                    preferred_element_type=jnp.float32) + params[f"b2_{l}"], 0.0)
        mean = jnp.mean(z, axis=0, keepdims=True)
        var = jnp.maximum(jnp.mean(z * z, axis=0, keepdims=True) - mean * mean, 0.0)
        scale = params[f"gamma_{l}"] * lax.rsqrt(var + BN_EPS)
        shift = params[f"beta_{l}"] - mean * scale
        h32 = jnp.maximum(z * scale + shift, 0.0)
        h16 = h32.astype(bf)
    return (h32 @ params["wf"] + params["bf"])[:, 0]


def nmrgnn_reference_f32(x, eq_labels, edge_index, params):
    """Faithful all-f32 NMRGNN forward (PyTorch semantics); used as a
    gross-divergence guard on the kernel's bf16 approximation."""
    N = x.shape[0]
    eq_emb = params["eq_table"][eq_labels]
    h = jnp.concatenate([x.astype(jnp.float32), eq_emb], axis=-1)
    adj = jnp.zeros((N, N), jnp.float32).at[edge_index[1], edge_index[0]].add(1.0)
    for l in range(NUM_LAYERS):
        eps = params["eps"][l]
        z = (1.0 + eps) * h + adj @ h
        z = jnp.maximum(z @ params[f"w1_{l}"] + params[f"b1_{l}"], 0.0)
        z = jnp.maximum(z @ params[f"w2_{l}"] + params[f"b2_{l}"], 0.0)
        mean = jnp.mean(z, axis=0, keepdims=True)
        var = jnp.mean((z - mean) ** 2, axis=0, keepdims=True)
        h = jnp.maximum((z - mean) * lax.rsqrt(var + BN_EPS)
                        * params[f"gamma_{l}"] + params[f"beta_{l}"], 0.0)
    return (h @ params["wf"] + params["bf"])[:, 0]


# ------------------------------------ main ------------------------------------
if __name__ == "__main__":
    key = jax.random.PRNGKey(0)
    k_x, k_eq, k_e, k_p = jax.random.split(key, 4)

    N, E = 16, 40
    x = jax.random.normal(k_x, (N, NUM_NODE_FEATURES), jnp.float32)
    eq_labels = jax.random.randint(k_eq, (N,), 0, NUM_EQ_CLASSES)
    edge_index = jax.random.randint(k_e, (2, E), 0, N)

    params = init_params(k_p)

    out = jax.block_until_ready(nmrgnn_forward(x, eq_labels, edge_index, params))
    assert out.shape == (N,)

    # Tight check vs. a reference mirroring the kernel's mixed precision.
    ref_m = nmrgnn_reference_mirror(x, eq_labels, edge_index, params)
    assert jnp.allclose(out, ref_m, atol=2e-3, rtol=2e-3), (out, ref_m)
    # Loose sanity guard vs. the faithful f32 model (bounds the bf16 deviation).
    ref_f = nmrgnn_reference_f32(x, eq_labels, edge_index, params)
    assert jnp.allclose(out, ref_f, atol=2.5e-1, rtol=2e-1), (out, ref_f)

    print("KERNEL_OK")
</pallas_src>

<mosaic_0001>
module attributes {stable_mosaic.version = 11 : i64} {
  func.func @nmrgnn_kernel(%arg0: memref<4xf32, #tpu.memory_space<smem>>, %arg1: memref<128x32xf32, #tpu.memory_space<vmem>>, %arg2: memref<128x128xbf16, #tpu.memory_space<vmem>>, %arg3: memref<6x32x32xbf16, #tpu.memory_space<vmem>>, %arg4: memref<3x8x32xf32, #tpu.memory_space<vmem>>, %arg5: memref<8x32xf32, #tpu.memory_space<vmem>>, %arg6: memref<8x128xf32, #tpu.memory_space<vmem>>) attributes {dimension_semantics = [], scalar_prefetch = 0 : i64, scratch_operands = 0 : i64, tpu.core_type = #tpu.core_type<tc>} {
    %c0 = arith.constant 0 : index
    %c0_0 = arith.constant 0 : index
    %0 = vector.load %arg2[%c0, %c0_0] : memref<128x128xbf16, #tpu.memory_space<vmem>>, vector<128x128xbf16>
    %c0_1 = arith.constant 0 : index
    %c0_2 = arith.constant 0 : index
    %1 = vector.load %arg1[%c0_1, %c0_2] : memref<128x32xf32, #tpu.memory_space<vmem>>, vector<128x32xf32>
    %2 = arith.truncf %1 : vector<128x32xf32> to vector<128x32xbf16>
    %3 = tpu.iota {dimensions = array<i32: 1>} : vector<1x128xi32>
    %c16_i32 = arith.constant 16 : i32
    %4 = vector.broadcast %c16_i32 : i32 to vector<1x128xi32>
    %5 = arith.cmpi slt, %3, %4 : vector<1x128xi32>
    %6 = arith.extui %5 : vector<1x128xi1> to vector<1x128xi32>
    %7 = arith.sitofp %6 : vector<1x128xi32> to vector<1x128xf32>
    %c0_3 = arith.constant 0 : index
    %8 = memref.load %arg0[%c0_3] : memref<4xf32, #tpu.memory_space<smem>>
    %cst = arith.constant dense<0.000000e+00> : vector<128x32xf32>
    %9 = tpu.matmul %0, %2, %cst {dimension_numbers = #tpu.dot_dimension_numbers<[1], [0], [0], [1], [0, 0, 1, 1], [], []>} : vector<128x128xbf16>, vector<128x32xbf16>, vector<128x32xf32> -> vector<128x32xf32>
    %cst_4 = arith.constant 1.000000e+00 : f32
    %10 = arith.addf %cst_4, %8 : f32
    %11 = vector.broadcast %10 : f32 to vector<128x32xf32>
    %12 = arith.mulf %11, %1 : vector<128x32xf32>
    %13 = arith.addf %12, %9 : vector<128x32xf32>
    %c0_5 = arith.constant 0 : index
    %c0_6 = arith.constant 0 : index
    %c0_7 = arith.constant 0 : index
    %14 = vector.load %arg3[%c0_5, %c0_6, %c0_7] : memref<6x32x32xbf16, #tpu.memory_space<vmem>>, vector<1x32x32xbf16>
    %15 = vector.shape_cast %14 : vector<1x32x32xbf16> to vector<32x32xbf16>
    %c1 = arith.constant 1 : index
    %c0_8 = arith.constant 0 : index
    %c0_9 = arith.constant 0 : index
    %16 = vector.load %arg3[%c1, %c0_8, %c0_9] : memref<6x32x32xbf16, #tpu.memory_space<vmem>>, vector<1x32x32xbf16>
    %17 = vector.shape_cast %16 : vector<1x32x32xbf16> to vector<32x32xbf16>
    %c0_10 = arith.constant 0 : index
    %c0_11 = arith.constant 0 : index
    %c0_12 = arith.constant 0 : index
    %18 = vector.load %arg4[%c0_10, %c0_11, %c0_12] : memref<3x8x32xf32, #tpu.memory_space<vmem>>, vector<1x8x32xf32>
    %19 = vector.shape_cast %18 : vector<1x8x32xf32> to vector<8x32xf32>
    %20 = vector.extract_strided_slice %19 {offsets = [0, 0], sizes = [1, 32], strides = [1, 1]} : vector<8x32xf32> to vector<1x32xf32>
    %21 = vector.extract_strided_slice %19 {offsets = [1, 0], sizes = [1, 32], strides = [1, 1]} : vector<8x32xf32> to vector<1x32xf32>
    %22 = vector.extract_strided_slice %19 {offsets = [2, 0], sizes = [1, 32], strides = [1, 1]} : vector<8x32xf32> to vector<1x32xf32>
    %23 = vector.extract_strided_slice %19 {offsets = [3, 0], sizes = [1, 32], strides = [1, 1]} : vector<8x32xf32> to vector<1x32xf32>
    %24 = arith.truncf %13 : vector<128x32xf32> to vector<128x32xbf16>
    %cst_13 = arith.constant dense<0.000000e+00> : vector<128x32xf32>
    %25 = tpu.matmul %24, %15, %cst_13 {dimension_numbers = #tpu.dot_dimension_numbers<[1], [0], [0], [1], [0, 0, 1, 1], [], []>} : vector<128x32xbf16>, vector<32x32xbf16>, vector<128x32xf32> -> vector<128x32xf32>
    %26 = vector.broadcast %20 : vector<1x32xf32> to vector<128x32xf32>
    %27 = arith.addf %25, %26 : vector<128x32xf32>
    %cst_14 = arith.constant 0.000000e+00 : f32
    %28 = vector.broadcast %cst_14 : f32 to vector<128x32xf32>
    %29 = arith.maximumf %27, %28 : vector<128x32xf32>
    %30 = arith.truncf %29 : vector<128x32xf32> to vector<128x32xbf16>
    %cst_15 = arith.constant dense<0.000000e+00> : vector<128x32xf32>
    %31 = tpu.matmul %30, %17, %cst_15 {dimension_numbers = #tpu.dot_dimension_numbers<[1], [0], [0], [1], [0, 0, 1, 1], [], []>} : vector<128x32xbf16>, vector<32x32xbf16>, vector<128x32xf32> -> vector<128x32xf32>
    %32 = vector.broadcast %21 : vector<1x32xf32> to vector<128x32xf32>
    %33 = arith.addf %31, %32 : vector<128x32xf32>
    %cst_16 = arith.constant 0.000000e+00 : f32
    %34 = vector.broadcast %cst_16 : f32 to vector<128x32xf32>
    %35 = arith.maximumf %33, %34 : vector<128x32xf32>
    %36 = arith.mulf %35, %35 : vector<128x32xf32>
    %37 = tpu.concatenate %35, %36 in 1 : vector<128x32xf32>, vector<128x32xf32> -> vector<128x64xf32>
    %cst_17 = arith.constant dense<0.000000e+00> : vector<1x64xf32>
    %38 = tpu.matmul %7, %37, %cst_17 {dimension_numbers = #tpu.dot_dimension_numbers<[1], [0], [0], [1], [0, 0, 1, 1], [], []>} : vector<1x128xf32>, vector<128x64xf32>, vector<1x64xf32> -> vector<1x64xf32>
    %39 = vector.extract_strided_slice %38 {offsets = [0, 0], sizes = [1, 32], strides = [1, 1]} : vector<1x64xf32> to vector<1x32xf32>
    %cst_18 = arith.constant 6.250000e-02 : f32
    %40 = vector.broadcast %cst_18 : f32 to vector<1x32xf32>
    %41 = arith.mulf %39, %40 : vector<1x32xf32>
    %42 = vector.extract_strided_slice %38 {offsets = [0, 32], sizes = [1, 32], strides = [1, 1]} : vector<1x64xf32> to vector<1x32xf32>
    %cst_19 = arith.constant 6.250000e-02 : f32
    %43 = vector.broadcast %cst_19 : f32 to vector<1x32xf32>
    %44 = arith.mulf %42, %43 : vector<1x32xf32>
    %45 = arith.mulf %41, %41 : vector<1x32xf32>
    %46 = arith.subf %44, %45 : vector<1x32xf32>
    %cst_20 = arith.constant 0.000000e+00 : f32
    %47 = vector.broadcast %cst_20 : f32 to vector<1x32xf32>
    %48 = arith.maximumf %46, %47 : vector<1x32xf32>
    %cst_21 = arith.constant 9.99999974E-6 : f32
    %49 = vector.broadcast %cst_21 : f32 to vector<1x32xf32>
    %50 = arith.addf %48, %49 : vector<1x32xf32>
    %51 = math.rsqrt %50 : vector<1x32xf32>
    %52 = arith.mulf %22, %51 : vector<1x32xf32>
    %53 = arith.mulf %41, %52 : vector<1x32xf32>
    %54 = arith.subf %23, %53 : vector<1x32xf32>
    %55 = vector.broadcast %52 : vector<1x32xf32> to vector<128x32xf32>
    %56 = arith.mulf %35, %55 : vector<128x32xf32>
    %57 = vector.broadcast %54 : vector<1x32xf32> to vector<128x32xf32>
    %58 = arith.addf %56, %57 : vector<128x32xf32>
    %cst_22 = arith.constant 0.000000e+00 : f32
    %59 = vector.broadcast %cst_22 : f32 to vector<128x32xf32>
    %60 = arith.maximumf %58, %59 : vector<128x32xf32>
    %61 = arith.truncf %60 : vector<128x32xf32> to vector<128x32xbf16>
    %c1_23 = arith.constant 1 : index
    %62 = memref.load %arg0[%c1_23] : memref<4xf32, #tpu.memory_space<smem>>
    %cst_24 = arith.constant dense<0.000000e+00> : vector<128x32xf32>
    %63 = tpu.matmul %0, %61, %cst_24 {dimension_numbers = #tpu.dot_dimension_numbers<[1], [0], [0], [1], [0, 0, 1, 1], [], []>} : vector<128x128xbf16>, vector<128x32xbf16>, vector<128x32xf32> -> vector<128x32xf32>
    %cst_25 = arith.constant 1.000000e+00 : f32
    %64 = arith.addf %cst_25, %62 : f32
    %65 = vector.broadcast %64 : f32 to vector<128x32xf32>
    %66 = arith.mulf %65, %60 : vector<128x32xf32>
    %67 = arith.addf %66, %63 : vector<128x32xf32>
    %c2 = arith.constant 2 : index
    %c0_26 = arith.constant 0 : index
    %c0_27 = arith.constant 0 : index
    %68 = vector.load %arg3[%c2, %c0_26, %c0_27] : memref<6x32x32xbf16, #tpu.memory_space<vmem>>, vector<1x32x32xbf16>
    %69 = vector.shape_cast %68 : vector<1x32x32xbf16> to vector<32x32xbf16>
    %c3 = arith.constant 3 : index
    %c0_28 = arith.constant 0 : index
    %c0_29 = arith.constant 0 : index
    %70 = vector.load %arg3[%c3, %c0_28, %c0_29] : memref<6x32x32xbf16, #tpu.memory_space<vmem>>, vector<1x32x32xbf16>
    %71 = vector.shape_cast %70 : vector<1x32x32xbf16> to vector<32x32xbf16>
    %c1_30 = arith.constant 1 : index
    %c0_31 = arith.constant 0 : index
    %c0_32 = arith.constant 0 : index
    %72 = vector.load %arg4[%c1_30, %c0_31, %c0_32] : memref<3x8x32xf32, #tpu.memory_space<vmem>>, vector<1x8x32xf32>
    %73 = vector.shape_cast %72 : vector<1x8x32xf32> to vector<8x32xf32>
    %74 = vector.extract_strided_slice %73 {offsets = [0, 0], sizes = [1, 32], strides = [1, 1]} : vector<8x32xf32> to vector<1x32xf32>
    %75 = vector.extract_strided_slice %73 {offsets = [1, 0], sizes = [1, 32], strides = [1, 1]} : vector<8x32xf32> to vector<1x32xf32>
    %76 = vector.extract_strided_slice %73 {offsets = [2, 0], sizes = [1, 32], strides = [1, 1]} : vector<8x32xf32> to vector<1x32xf32>
    %77 = vector.extract_strided_slice %73 {offsets = [3, 0], sizes = [1, 32], strides = [1, 1]} : vector<8x32xf32> to vector<1x32xf32>
    %78 = arith.truncf %67 : vector<128x32xf32> to vector<128x32xbf16>
    %cst_33 = arith.constant dense<0.000000e+00> : vector<128x32xf32>
    %79 = tpu.matmul %78, %69, %cst_33 {dimension_numbers = #tpu.dot_dimension_numbers<[1], [0], [0], [1], [0, 0, 1, 1], [], []>} : vector<128x32xbf16>, vector<32x32xbf16>, vector<128x32xf32> -> vector<128x32xf32>
    %80 = vector.broadcast %74 : vector<1x32xf32> to vector<128x32xf32>
    %81 = arith.addf %79, %80 : vector<128x32xf32>
    %cst_34 = arith.constant 0.000000e+00 : f32
    %82 = vector.broadcast %cst_34 : f32 to vector<128x32xf32>
    %83 = arith.maximumf %81, %82 : vector<128x32xf32>
    %84 = arith.truncf %83 : vector<128x32xf32> to vector<128x32xbf16>
    %cst_35 = arith.constant dense<0.000000e+00> : vector<128x32xf32>
    %85 = tpu.matmul %84, %71, %cst_35 {dimension_numbers = #tpu.dot_dimension_numbers<[1], [0], [0], [1], [0, 0, 1, 1], [], []>} : vector<128x32xbf16>, vector<32x32xbf16>, vector<128x32xf32> -> vector<128x32xf32>
    %86 = vector.broadcast %75 : vector<1x32xf32> to vector<128x32xf32>
    %87 = arith.addf %85, %86 : vector<128x32xf32>
    %cst_36 = arith.constant 0.000000e+00 : f32
    %88 = vector.broadcast %cst_36 : f32 to vector<128x32xf32>
    %89 = arith.maximumf %87, %88 : vector<128x32xf32>
    %90 = arith.mulf %89, %89 : vector<128x32xf32>
    %91 = tpu.concatenate %89, %90 in 1 : vector<128x32xf32>, vector<128x32xf32> -> vector<128x64xf32>
    %cst_37 = arith.constant dense<0.000000e+00> : vector<1x64xf32>
    %92 = tpu.matmul %7, %91, %cst_37 {dimension_numbers = #tpu.dot_dimension_numbers<[1], [0], [0], [1], [0, 0, 1, 1], [], []>} : vector<1x128xf32>, vector<128x64xf32>, vector<1x64xf32> -> vector<1x64xf32>
    %93 = vector.extract_strided_slice %92 {offsets = [0, 0], sizes = [1, 32], strides = [1, 1]} : vector<1x64xf32> to vector<1x32xf32>
    %cst_38 = arith.constant 6.250000e-02 : f32
    %94 = vector.broadcast %cst_38 : f32 to vector<1x32xf32>
    %95 = arith.mulf %93, %94 : vector<1x32xf32>
    %96 = vector.extract_strided_slice %92 {offsets = [0, 32], sizes = [1, 32], strides = [1, 1]} : vector<1x64xf32> to vector<1x32xf32>
    %cst_39 = arith.constant 6.250000e-02 : f32
    %97 = vector.broadcast %cst_39 : f32 to vector<1x32xf32>
    %98 = arith.mulf %96, %97 : vector<1x32xf32>
    %99 = arith.mulf %95, %95 : vector<1x32xf32>
    %100 = arith.subf %98, %99 : vector<1x32xf32>
    %cst_40 = arith.constant 0.000000e+00 : f32
    %101 = vector.broadcast %cst_40 : f32 to vector<1x32xf32>
    %102 = arith.maximumf %100, %101 : vector<1x32xf32>
    %cst_41 = arith.constant 9.99999974E-6 : f32
    %103 = vector.broadcast %cst_41 : f32 to vector<1x32xf32>
    %104 = arith.addf %102, %103 : vector<1x32xf32>
    %105 = math.rsqrt %104 : vector<1x32xf32>
    %106 = arith.mulf %76, %105 : vector<1x32xf32>
    %107 = arith.mulf %95, %106 : vector<1x32xf32>
    %108 = arith.subf %77, %107 : vector<1x32xf32>
    %109 = vector.broadcast %106 : vector<1x32xf32> to vector<128x32xf32>
    %110 = arith.mulf %89, %109 : vector<128x32xf32>
    %111 = vector.broadcast %108 : vector<1x32xf32> to vector<128x32xf32>
    %112 = arith.addf %110, %111 : vector<128x32xf32>
    %cst_42 = arith.constant 0.000000e+00 : f32
    %113 = vector.broadcast %cst_42 : f32 to vector<128x32xf32>
    %114 = arith.maximumf %112, %113 : vector<128x32xf32>
    %115 = arith.truncf %114 : vector<128x32xf32> to vector<128x32xbf16>
    %c2_43 = arith.constant 2 : index
    %116 = memref.load %arg0[%c2_43] : memref<4xf32, #tpu.memory_space<smem>>
    %cst_44 = arith.constant dense<0.000000e+00> : vector<128x32xf32>
    %117 = tpu.matmul %0, %115, %cst_44 {dimension_numbers = #tpu.dot_dimension_numbers<[1], [0], [0], [1], [0, 0, 1, 1], [], []>} : vector<128x128xbf16>, vector<128x32xbf16>, vector<128x32xf32> -> vector<128x32xf32>
    %cst_45 = arith.constant 1.000000e+00 : f32
    %118 = arith.addf %cst_45, %116 : f32
    %119 = vector.broadcast %118 : f32 to vector<128x32xf32>
    %120 = arith.mulf %119, %114 : vector<128x32xf32>
    %121 = arith.addf %120, %117 : vector<128x32xf32>
    %c4 = arith.constant 4 : index
    %c0_46 = arith.constant 0 : index
    %c0_47 = arith.constant 0 : index
    %122 = vector.load %arg3[%c4, %c0_46, %c0_47] : memref<6x32x32xbf16, #tpu.memory_space<vmem>>, vector<1x32x32xbf16>
    %123 = vector.shape_cast %122 : vector<1x32x32xbf16> to vector<32x32xbf16>
    %c5 = arith.constant 5 : index
    %c0_48 = arith.constant 0 : index
    %c0_49 = arith.constant 0 : index
    %124 = vector.load %arg3[%c5, %c0_48, %c0_49] : memref<6x32x32xbf16, #tpu.memory_space<vmem>>, vector<1x32x32xbf16>
    %125 = vector.shape_cast %124 : vector<1x32x32xbf16> to vector<32x32xbf16>
    %c2_50 = arith.constant 2 : index
    %c0_51 = arith.constant 0 : index
    %c0_52 = arith.constant 0 : index
    %126 = vector.load %arg4[%c2_50, %c0_51, %c0_52] : memref<3x8x32xf32, #tpu.memory_space<vmem>>, vector<1x8x32xf32>
    %127 = vector.shape_cast %126 : vector<1x8x32xf32> to vector<8x32xf32>
    %128 = vector.extract_strided_slice %127 {offsets = [0, 0], sizes = [1, 32], strides = [1, 1]} : vector<8x32xf32> to vector<1x32xf32>
    %129 = vector.extract_strided_slice %127 {offsets = [1, 0], sizes = [1, 32], strides = [1, 1]} : vector<8x32xf32> to vector<1x32xf32>
    %130 = vector.extract_strided_slice %127 {offsets = [2, 0], sizes = [1, 32], strides = [1, 1]} : vector<8x32xf32> to vector<1x32xf32>
    %131 = vector.extract_strided_slice %127 {offsets = [3, 0], sizes = [1, 32], strides = [1, 1]} : vector<8x32xf32> to vector<1x32xf32>
    %132 = arith.truncf %121 : vector<128x32xf32> to vector<128x32xbf16>
    %cst_53 = arith.constant dense<0.000000e+00> : vector<128x32xf32>
    %133 = tpu.matmul %132, %123, %cst_53 {dimension_numbers = #tpu.dot_dimension_numbers<[1], [0], [0], [1], [0, 0, 1, 1], [], []>} : vector<128x32xbf16>, vector<32x32xbf16>, vector<128x32xf32> -> vector<128x32xf32>
    %134 = vector.broadcast %128 : vector<1x32xf32> to vector<128x32xf32>
    %135 = arith.addf %133, %134 : vector<128x32xf32>
    %cst_54 = arith.constant 0.000000e+00 : f32
    %136 = vector.broadcast %cst_54 : f32 to vector<128x32xf32>
    %137 = arith.maximumf %135, %136 : vector<128x32xf32>
    %138 = arith.truncf %137 : vector<128x32xf32> to vector<128x32xbf16>
    %cst_55 = arith.constant dense<0.000000e+00> : vector<128x32xf32>
    %139 = tpu.matmul %138, %125, %cst_55 {dimension_numbers = #tpu.dot_dimension_numbers<[1], [0], [0], [1], [0, 0, 1, 1], [], []>} : vector<128x32xbf16>, vector<32x32xbf16>, vector<128x32xf32> -> vector<128x32xf32>
    %140 = vector.broadcast %129 : vector<1x32xf32> to vector<128x32xf32>
    %141 = arith.addf %139, %140 : vector<128x32xf32>
    %cst_56 = arith.constant 0.000000e+00 : f32
    %142 = vector.broadcast %cst_56 : f32 to vector<128x32xf32>
    %143 = arith.maximumf %141, %142 : vector<128x32xf32>
    %144 = arith.mulf %143, %143 : vector<128x32xf32>
    %145 = tpu.concatenate %143, %144 in 1 : vector<128x32xf32>, vector<128x32xf32> -> vector<128x64xf32>
    %cst_57 = arith.constant dense<0.000000e+00> : vector<1x64xf32>
    %146 = tpu.matmul %7, %145, %cst_57 {dimension_numbers = #tpu.dot_dimension_numbers<[1], [0], [0], [1], [0, 0, 1, 1], [], []>} : vector<1x128xf32>, vector<128x64xf32>, vector<1x64xf32> -> vector<1x64xf32>
    %147 = vector.extract_strided_slice %146 {offsets = [0, 0], sizes = [1, 32], strides = [1, 1]} : vector<1x64xf32> to vector<1x32xf32>
    %cst_58 = arith.constant 6.250000e-02 : f32
    %148 = vector.broadcast %cst_58 : f32 to vector<1x32xf32>
    %149 = arith.mulf %147, %148 : vector<1x32xf32>
    %150 = vector.extract_strided_slice %146 {offsets = [0, 32], sizes = [1, 32], strides = [1, 1]} : vector<1x64xf32> to vector<1x32xf32>
    %cst_59 = arith.constant 6.250000e-02 : f32
    %151 = vector.broadcast %cst_59 : f32 to vector<1x32xf32>
    %152 = arith.mulf %150, %151 : vector<1x32xf32>
    %153 = arith.mulf %149, %149 : vector<1x32xf32>
    %154 = arith.subf %152, %153 : vector<1x32xf32>
    %cst_60 = arith.constant 0.000000e+00 : f32
    %155 = vector.broadcast %cst_60 : f32 to vector<1x32xf32>
    %156 = arith.maximumf %154, %155 : vector<1x32xf32>
    %cst_61 = arith.constant 9.99999974E-6 : f32
    %157 = vector.broadcast %cst_61 : f32 to vector<1x32xf32>
    %158 = arith.addf %156, %157 : vector<1x32xf32>
    %159 = math.rsqrt %158 : vector<1x32xf32>
    %160 = arith.mulf %130, %159 : vector<1x32xf32>
    %161 = arith.mulf %149, %160 : vector<1x32xf32>
    %162 = arith.subf %131, %161 : vector<1x32xf32>
    %163 = vector.broadcast %160 : vector<1x32xf32> to vector<128x32xf32>
    %164 = arith.mulf %143, %163 : vector<128x32xf32>
    %165 = vector.broadcast %162 : vector<1x32xf32> to vector<128x32xf32>
    %166 = arith.addf %164, %165 : vector<128x32xf32>
    %cst_62 = arith.constant 0.000000e+00 : f32
    %167 = vector.broadcast %cst_62 : f32 to vector<128x32xf32>
    %168 = arith.maximumf %166, %167 : vector<128x32xf32>
    %c0_63 = arith.constant 0 : index
    %c0_64 = arith.constant 0 : index
    %169 = vector.load %arg5[%c0_63, %c0_64] : memref<8x32xf32, #tpu.memory_space<vmem>>, vector<8x32xf32>
    %170 = tpu.transpose %168, [1, 0] : vector<128x32xf32> -> vector<32x128xf32>
    %cst_65 = arith.constant dense<0.000000e+00> : vector<8x128xf32>
    %171 = tpu.matmul %169, %170, %cst_65 {dimension_numbers = #tpu.dot_dimension_numbers<[1], [0], [0], [1], [0, 0, 1, 1], [], []>} : vector<8x32xf32>, vector<32x128xf32>, vector<8x128xf32> -> vector<8x128xf32>
    %c3_66 = arith.constant 3 : index
    %172 = memref.load %arg0[%c3_66] : memref<4xf32, #tpu.memory_space<smem>>
    %173 = vector.broadcast %172 : f32 to vector<8x128xf32>
    %174 = arith.addf %171, %173 : vector<8x128xf32>
    %c0_67 = arith.constant 0 : index
    %c0_68 = arith.constant 0 : index
    %175 = vector.load %arg6[%c0_67, %c0_68] : memref<8x128xf32, #tpu.memory_space<vmem>>, vector<8x128xf32>
    tpu.vector_store %arg6[%c0_67, %c0_68], %174 {strides = array<i32>} : memref<8x128xf32, #tpu.memory_space<vmem>>, vector<8x128xf32>,
    return
  }
}

</mosaic_0001>

<llo_original>
// kernel: tpu_custom_call.1
$region0: #{tpu_custom_call.1}
  #allocation0 [shape = 'u32[]', space=smem, size = 0x4, offset = 0x4, fixed_abs, tag = 'smem constant byte address 0x4 - core index']
  #allocation1 [shape = 'u32[144,128]{1,0:T(1,128)}', space=vmem, size = 0x12000, scoped, tag = 'internal scratch']
  %s0 = inlined_call_operand.vmem [shape: f32[4], index: 0, kind: input, shape index: {}]
  %s1 = inlined_call_operand.vmem [shape: f32[128,32], index: 1, kind: input, shape index: {}]
  %s2 = inlined_call_operand.vmem [shape: bf16[128,128], index: 2, kind: input, shape index: {}]
  %s3 = inlined_call_operand.vmem [shape: bf16[6,32,32], index: 3, kind: input, shape index: {}]
  %s4 = inlined_call_operand.hbm [shape: f32[3,8,32], index: 4, kind: input, shape index: {}]
  %s5 = inlined_call_operand.vmem [shape: f32[8,32], index: 5, kind: input, shape index: {}]
  %s6 = inlined_call_operand.hbm [shape: f32[8,128], index: 6, kind: output, shape index: {}]
  %s7 = sld [smem:[#allocation0]]
  $region42: #{tpu_custom_call.1} parent=0
    _
  %s9 = ssub.s32 1, %s7
  %s10 = scalar_select 0, %s9, %s7
  $region1: #{tpu_custom_call.1} parent=0
    #allocation2 [shape = 'u8[512]{0}', space=smem, size = 0x200, scoped, tag = 'input window, operand 0, single buffered']
    #allocation3 [shape = 's32[1]{0}', space=sflag, size = 0x4, scoped, tag = 'scoped memory for tpu_custom_call.1']
    #allocation4 [shape = 's32[1]{0}', space=sflag, size = 0x4, scoped, tag = 'scoped memory for tpu_custom_call.1']
    #allocation5 [shape = 's32[1]{0}', space=sflag, size = 0x4, scoped, tag = 'scoped memory for tpu_custom_call.1']
    #allocation6 [shape = 'u8[12288]{0}', space=vmem, size = 0x3000, scoped, tag = 'input window, operand 4, single buffered']
    #allocation7 [shape = 'u8[4096]{0}', space=vmem, size = 0x1000, scoped, tag = 'output window, operand 0, single buffered']
    %11 = vsyncpa [#allocation5], 0
    %12 = vsyncpa [#allocation3], 0
    %13 = vsyncpa [#allocation4], 0
    // Predicated region
    $region2: #{tpu_custom_call.1} parent=1 // pred_check
      _
    $region3: #{tpu_custom_call.1} parent=1 // pred_check_branch
      %15 = sbr.rel (0) target = $region5
    $region4: #{tpu_custom_call.1} parent=1 // pred_region
      %s17 = ssub.s32 16, 16
      %18 = vsyncadd [#allocation5], %s17
      %s20 = sshll.u32 %s0, 4
      %s21 = int_to_ptr.vmem [resolvable:$true] %s20
      %23 = dma.vmem_to_smem %s21, 16, [#allocation2], [#allocation5]
    $region5: #{tpu_custom_call.1} parent=1 // pred_fallthru
      _
    // Predicated region
    $region6: #{tpu_custom_call.1} parent=1 // pred_check
      _
    $region7: #{tpu_custom_call.1} parent=1 // pred_check_branch
      %25 = sbr.rel (0) target = $region9
    $region8: #{tpu_custom_call.1} parent=1 // pred_region
      _
    $region9: #{tpu_custom_call.1} parent=1 // pred_fallthru
      _
    // Predicated region
    $region10: #{tpu_custom_call.1} parent=1 // pred_check
      _
    $region11: #{tpu_custom_call.1} parent=1 // pred_check_branch
      %27 = sbr.rel (0) target = $region13
    $region12: #{tpu_custom_call.1} parent=1 // pred_region
      _
    $region13: #{tpu_custom_call.1} parent=1 // pred_fallthru
      _
    // Predicated region
    $region14: #{tpu_custom_call.1} parent=1 // pred_check
      _
    $region15: #{tpu_custom_call.1} parent=1 // pred_check_branch
      %29 = sbr.rel (0) target = $region17
    $region16: #{tpu_custom_call.1} parent=1 // pred_region
      _
    $region17: #{tpu_custom_call.1} parent=1 // pred_fallthru
      _
    // Predicated region
    $region18: #{tpu_custom_call.1} parent=1 // pred_check
      _
    $region19: #{tpu_custom_call.1} parent=1 // pred_check_branch
      %31 = sbr.rel (0) target = $region21
    $region20: #{tpu_custom_call.1} parent=1 // pred_region
      %s33 = ssub.s32 384, 384
      %34 = vsyncadd [#allocation3], %s33
      %s35 = sshll.u32 [#allocation6], 4
      %s36 = int_to_ptr.vmem [resolvable:$true] %s35
      %41 = dma.hbm_to_vmem [thread:$0]  %s4, 384, %s36, [#allocation3], 128, 128, 8
    $region21: #{tpu_custom_call.1} parent=1 // pred_fallthru
      _
    // Predicated region
    $region22: #{tpu_custom_call.1} parent=1 // pred_check
      _
    $region23: #{tpu_custom_call.1} parent=1 // pred_check_branch
      %43 = sbr.rel (0) target = $region25
    $region24: #{tpu_custom_call.1} parent=1 // pred_region
      _
    $region25: #{tpu_custom_call.1} parent=1 // pred_fallthru
      _
    // Predicated region
    $region26: #{tpu_custom_call.1} parent=1 // pred_check
      _
    $region27: #{tpu_custom_call.1} parent=1 // pred_check_branch
      %45 = sbr.rel (0) target = $region29
    $region28: #{tpu_custom_call.1} parent=1 // pred_region
      %46 = dma.done [#allocation5], 16
    $region29: #{tpu_custom_call.1} parent=1 // pred_fallthru
      _
    // Predicated region
    $region30: #{tpu_custom_call.1} parent=1 // pred_check
      _
    $region31: #{tpu_custom_call.1} parent=1 // pred_check_branch
      %48 = sbr.rel (0) target = $region33
    $region32: #{tpu_custom_call.1} parent=1 // pred_region
      %49 = dma.done [#allocation3], 384
    $region33: #{tpu_custom_call.1} parent=1 // pred_fallthru
      _
    %50 = sfence
    %v52 = vld [vmem:[%s2] sm:$0xf]
    %v53 = vld [vmem:[%s2 + $0x4] sm:$0xf]
    %v54 = vld [vmem:[%s2 + $0x8] sm:$0xf]
    %v55 = vld [vmem:[%s2 + $0xc] sm:$0xf]
    %v56 = vld [vmem:[%s2 + $0x10] sm:$0xf]
    %v57 = vld [vmem:[%s2 + $0x14] sm:$0xf]
    %v58 = vld [vmem:[%s2 + $0x18] sm:$0xf]
    %v59 = vld [vmem:[%s2 + $0x1c] sm:$0xf]
    %v60 = vld [vmem:[%s2 + $0x20] sm:$0xf]
    %v61 = vld [vmem:[%s2 + $0x24] sm:$0xf]
    %v62 = vld [vmem:[%s2 + $0x28] sm:$0xf]
    %v63 = vld [vmem:[%s2 + $0x2c] sm:$0xf]
    %v64 = vld [vmem:[%s2 + $0x30] sm:$0xf]
    %v65 = vld [vmem:[%s2 + $0x34] sm:$0xf]
    %v66 = vld [vmem:[%s2 + $0x38] sm:$0xf]
    %v67 = vld [vmem:[%s2 + $0x3c] sm:$0xf]
    %v68 = vld [vmem:[%s1] sm:$0xff]
    %v69 = vld [vmem:[%s1 + $0x8] sm:$0xff]
    %v70 = vld [vmem:[%s1 + $0x10] sm:$0xff]
    %v71 = vld [vmem:[%s1 + $0x18] sm:$0xff]
    %v72 = vld [vmem:[%s1 + $0x20] sm:$0xff]
    %v73 = vld [vmem:[%s1 + $0x28] sm:$0xff]
    %v74 = vld [vmem:[%s1 + $0x30] sm:$0xff]
    %v75 = vld [vmem:[%s1 + $0x38] sm:$0xff]
    %v76 = vld [vmem:[%s1 + $0x40] sm:$0xff]
    %v77 = vld [vmem:[%s1 + $0x48] sm:$0xff]
    %v78 = vld [vmem:[%s1 + $0x50] sm:$0xff]
    %v79 = vld [vmem:[%s1 + $0x58] sm:$0xff]
    %v80 = vld [vmem:[%s1 + $0x60] sm:$0xff]
    %v81 = vld [vmem:[%s1 + $0x68] sm:$0xff]
    %v82 = vld [vmem:[%s1 + $0x70] sm:$0xff]
    %v83 = vld [vmem:[%s1 + $0x78] sm:$0xff]
    %v84 = vpack.c.bf16 %v69, %v68
    %v85 = vpack.c.bf16 %v71, %v70
    %v86 = vpack.c.bf16 %v73, %v72
    %v87 = vpack.c.bf16 %v75, %v74
    %v88 = vpack.c.bf16 %v77, %v76
    %v89 = vpack.c.bf16 %v79, %v78
    %v90 = vpack.c.bf16 %v81, %v80
    %v91 = vpack.c.bf16 %v83, %v82
    %v92 = vlaneseq
    %v93 = vand.u32 %v92, 127
    %vm94 = vcmp.lt.s32.totalorder %v93, 16
    %v95 = vsel %vm94, 1, 0
    %v96 = vcvt.s32.f32 %v95
    %s97 = sld [smem:[#allocation2]]
    %v114 = vunpack.c.l.b16 %v52
    %v115 = vunpack.c.l.b16 %v53
    %v116 = vunpack.c.l.b16 %v54
    %v117 = vunpack.c.l.b16 %v55
    %v118 = vunpack.c.l.b16 %v56
    %v119 = vunpack.c.l.b16 %v57
    %v120 = vunpack.c.l.b16 %v58
    %v121 = vunpack.c.l.b16 %v59
    %v122 = vunpack.c.l.b16 %v60
    %v123 = vunpack.c.l.b16 %v61
    %v124 = vunpack.c.l.b16 %v62
    %v125 = vunpack.c.l.b16 %v63
    %v126 = vunpack.c.l.b16 %v64
    %v127 = vunpack.c.l.b16 %v65
    %v128 = vunpack.c.l.b16 %v66
    %v129 = vunpack.c.l.b16 %v67
    %v130 = vpack.c.b16 %v115, %v114
    %v131 = vpack.c.b16 %v117, %v116
    %v132 = vpack.c.b16 %v119, %v118
    %v133 = vpack.c.b16 %v121, %v120
    %v134 = vpack.c.b16 %v123, %v122
    %v135 = vpack.c.b16 %v125, %v124
    %v136 = vpack.c.b16 %v127, %v126
    %v137 = vpack.c.b16 %v129, %v128
    %146 = vmatprep.subr.bf16.mxu0 0
    %147 = vmatpush1.bf16.msra.mxu0 %v84
    %148 = vmatprep.subr.bf16.mxu0 0
    %149 = vmatpush1.bf16.msra.mxu0 %v85
    %150 = vmatprep.subr.bf16.mxu0 0
    %151 = vmatpush1.bf16.msra.mxu0 %v86
    %152 = vmatprep.subr.bf16.mxu0 0
    %153 = vmatpush1.bf16.msra.mxu0 %v87
    %154 = vmatprep.subr.bf16.mxu0 0
    %155 = vmatpush1.bf16.msra.mxu0 %v88
    %156 = vmatprep.subr.bf16.mxu0 0
    %157 = vmatpush1.bf16.msra.mxu0 %v89
    %158 = vmatprep.subr.bf16.mxu0 0
    %159 = vmatpush1.bf16.msra.mxu0 %v90
    %160 = vmatprep.subr.bf16.mxu0 0
    %161 = vmatpush1.bf16.msra.mxu0 %v91
    %162 = vmatprep.subr.bf16.mxu0 0
    %163 = vmatpush1.bf16.msra.mxu0 0
    %164 = vmatprep.subr.bf16.mxu0 0
    %165 = vmatpush1.bf16.msra.mxu0 0
    %166 = vmatprep.subr.bf16.mxu0 0
    %167 = vmatpush1.bf16.msra.mxu0 0
    %168 = vmatprep.subr.bf16.mxu0 0
    %169 = vmatpush1.bf16.msra.mxu0 0
    %170 = vmatprep.subr.bf16.mxu0 0
    %171 = vmatpush1.bf16.msra.mxu0 0
    %172 = vmatprep.subr.bf16.mxu0 0
    %173 = vmatpush1.bf16.msra.mxu0 0
    %174 = vmatprep.subr.bf16.mxu0 0
    %175 = vmatpush1.bf16.msra.mxu0 0
    %176 = vmatprep.subr.bf16.mxu0 0
    %177 = vmatpush1.bf16.msra.mxu0 0
    %178 = vmatprep.mubr.bf16.mxu0 0
    %179 = vmatmul.mubr.bf16.gmra.mrb[0].mxu0 %v130
    %v180 = vpop.f32.mrb[0].mxu0
    %v181 = vadd.f32 0.0, %v180
    %v182 = vpop.f32.mrb[0].mxu0
    %v183 = vpop.f32.mrb[0].mxu0
    %v184 = vadd.f32 0.0, %v183
    %v185 = vpop.f32.mrb[0].mxu0
    %186 = vmatprep.mubr.bf16.mxu0 0
    %187 = vmatmul.mubr.bf16.gmra.mrb[0].mxu0 %v131
    %v188 = vpop.f32.mrb[0].mxu0
    %v189 = vadd.f32 0.0, %v188
    %v190 = vpop.f32.mrb[0].mxu0
    %v191 = vpop.f32.mrb[0].mxu0
    %v192 = vadd.f32 0.0, %v191
    %v193 = vpop.f32.mrb[0].mxu0
    %194 = vmatprep.mubr.bf16.mxu0 0
    %195 = vmatmul.mubr.bf16.gmra.mrb[0].mxu0 %v132
    %v196 = vpop.f32.mrb[0].mxu0
    %v197 = vadd.f32 0.0, %v196
    %v198 = vpop.f32.mrb[0].mxu0
    %v199 = vpop.f32.mrb[0].mxu0
    %v200 = vadd.f32 0.0, %v199
    %v201 = vpop.f32.mrb[0].mxu0
    %202 = vmatprep.mubr.bf16.mxu0 0
    %203 = vmatmul.mubr.bf16.gmra.mrb[0].mxu0 %v133
    %v204 = vpop.f32.mrb[0].mxu0
    %v205 = vadd.f32 0.0, %v204
    %v206 = vpop.f32.mrb[0].mxu0
    %v207 = vpop.f32.mrb[0].mxu0
    %v208 = vadd.f32 0.0, %v207
    %v209 = vpop.f32.mrb[0].mxu0
    %210 = vmatprep.mubr.bf16.mxu0 0
    %211 = vmatmul.mubr.bf16.gmra.mrb[0].mxu0 %v134
    %v212 = vpop.f32.mrb[0].mxu0
    %v213 = vadd.f32 0.0, %v212
    %v214 = vpop.f32.mrb[0].mxu0
    %v215 = vpop.f32.mrb[0].mxu0
    %v216 = vadd.f32 0.0, %v215
    %v217 = vpop.f32.mrb[0].mxu0
    %218 = vmatprep.mubr.bf16.mxu0 0
    %219 = vmatmul.mubr.bf16.gmra.mrb[0].mxu0 %v135
    %v220 = vpop.f32.mrb[0].mxu0
    %v221 = vadd.f32 0.0, %v220
    %v222 = vpop.f32.mrb[0].mxu0
    %v223 = vpop.f32.mrb[0].mxu0
    %v224 = vadd.f32 0.0, %v223
    %v225 = vpop.f32.mrb[0].mxu0
    %226 = vmatprep.mubr.bf16.mxu0 0
    %227 = vmatmul.mubr.bf16.gmra.mrb[0].mxu0 %v136
    %v228 = vpop.f32.mrb[0].mxu0
    %v229 = vadd.f32 0.0, %v228
    %v230 = vpop.f32.mrb[0].mxu0
    %v231 = vpop.f32.mrb[0].mxu0
    %v232 = vadd.f32 0.0, %v231
    %v233 = vpop.f32.mrb[0].mxu0
    %234 = vmatprep.mubr.bf16.mxu0 0
    %235 = vmatmul.mubr.bf16.gmra.mrb[0].mxu0 %v137
    %v236 = vpop.f32.mrb[0].mxu0
    %v237 = vadd.f32 0.0, %v236
    %v238 = vpop.f32.mrb[0].mxu0
    %v239 = vpop.f32.mrb[0].mxu0
    %v240 = vadd.f32 0.0, %v239
    %v241 = vpop.f32.mrb[0].mxu0
    %242 = vdwg.mxu0
    %s243 = sadd.f32 %s97, 1.0
    %v244 = vstv %s243
    %v245 = vmul.f32 %v244, %v68
    %v246 = vmul.f32 %v244, %v69
    %v247 = vmul.f32 %v244, %v70
    %v248 = vmul.f32 %v244, %v71
    %v249 = vmul.f32 %v244, %v72
    %v250 = vmul.f32 %v244, %v73
    %v251 = vmul.f32 %v244, %v74
    %v252 = vmul.f32 %v244, %v75
    %v253 = vmul.f32 %v244, %v76
    %v254 = vmul.f32 %v244, %v77
    %v255 = vmul.f32 %v244, %v78
    %v256 = vmul.f32 %v244, %v79
    %v257 = vmul.f32 %v244, %v80
    %v258 = vmul.f32 %v244, %v81
    %v259 = vmul.f32 %v244, %v82
    %v260 = vmul.f32 %v244, %v83
    %v261 = vadd.f32 %v245, %v181
    %v262 = vadd.f32 %v246, %v184
    %v263 = vadd.f32 %v247, %v189
    %v264 = vadd.f32 %v248, %v192
    %v265 = vadd.f32 %v249, %v197
    %v266 = vadd.f32 %v250, %v200
    %v267 = vadd.f32 %v251, %v205
    %v268 = vadd.f32 %v252, %v208
    %v269 = vadd.f32 %v253, %v213
    %v270 = vadd.f32 %v254, %v216
    %v271 = vadd.f32 %v255, %v221
    %v272 = vadd.f32 %v256, %v224
    %v273 = vadd.f32 %v257, %v229
    %v274 = vadd.f32 %v258, %v232
    %v275 = vadd.f32 %v259, %v237
    %v276 = vadd.f32 %v260, %v240
    %v277 = vld [vmem:[%s3] sm:$0xf]
    %v278 = vld [vmem:[%s3 + $0x4] sm:$0xf]
    %v279 = vld [vmem:[%s3 + $0x8] sm:$0xf]
    %v280 = vld [vmem:[%s3 + $0xc] sm:$0xf]
    %s281 = scalar_lea.vmem %s3, 16
    %v282 = vld [vmem:[%s281] sm:$0xf]
    %v283 = vld [vmem:[%s281 + $0x4] sm:$0xf]
    %v284 = vld [vmem:[%s281 + $0x8] sm:$0xf]
    %v285 = vld [vmem:[%s281 + $0xc] sm:$0xf]
    %v286 = vld [vmem:[#allocation6] sm:$0xff]
    %v287 = vpack.c.bf16 %v262, %v261
    %v288 = vpack.c.bf16 %v264, %v263
    %v289 = vpack.c.bf16 %v266, %v265
    %v290 = vpack.c.bf16 %v268, %v267
    %v291 = vpack.c.bf16 %v270, %v269
    %v292 = vpack.c.bf16 %v272, %v271
    %v293 = vpack.c.bf16 %v274, %v273
    %v294 = vpack.c.bf16 %v276, %v275
    %v295 = vlaneseq
    %v296 = vshrl.u32 %v295, 7
    %v297 = vsub.s32 0, %v296
    %v298 = vrot.slane %v286, %v297
    %v303 = vunpack.c.l.b16 %v277
    %v304 = vunpack.c.l.b16 %v278
    %v305 = vunpack.c.l.b16 %v279
    %v306 = vunpack.c.l.b16 %v280
    %v307 = vpack.c.b16 %v304, %v303
    %v308 = vpack.c.b16 %v306, %v305
    %vm311 = vcmask 261120
    %v313 = vsel %vm311, %v287, 0
    %v316 = vsel %vm311, %v288, 0
    %v319 = vsel %vm311, %v289, 0
    %v322 = vsel %vm311, %v290, 0
    %v325 = vsel %vm311, %v291, 0
    %v328 = vsel %vm311, %v292, 0
    %v331 = vsel %vm311, %v293, 0
    %v334 = vsel %vm311, %v294, 0
    %336 = vmatprep.subr.bf16.mxu0 0
    %337 = vmatpush1.bf16.msra.mxu0 %v307
    %338 = vmatprep.subr.bf16.mxu0 0
    %339 = vmatpush1.bf16.msra.mxu0 %v308
    %340 = vmatprep.subr.bf16.mxu0 0
    %341 = vmatpush1.bf16.msra.mxu0 0
    %342 = vmatprep.subr.bf16.mxu0 0
    %343 = vmatpush1.bf16.msra.mxu0 0
    %344 = vmatprep.subr.bf16.mxu0 0
    %345 = vmatpush1.bf16.msra.mxu0 0
    %346 = vmatprep.subr.bf16.mxu0 0
    %347 = vmatpush1.bf16.msra.mxu0 0
    %348 = vmatprep.subr.bf16.mxu0 0
    %349 = vmatpush1.bf16.msra.mxu0 0
    %350 = vmatprep.subr.bf16.mxu0 0
    %351 = vmatpush1.bf16.msra.mxu0 0
    %352 = vmatprep.subr.bf16.mxu0 0
    %353 = vmatpush1.bf16.msra.mxu0 0
    %354 = vmatprep.subr.bf16.mxu0 0
    %355 = vmatpush1.bf16.msra.mxu0 0
    %356 = vmatprep.subr.bf16.mxu0 0
    %357 = vmatpush1.bf16.msra.mxu0 0
    %358 = vmatprep.subr.bf16.mxu0 0
    %359 = vmatpush1.bf16.msra.mxu0 0
    %360 = vmatprep.subr.bf16.mxu0 0
    %361 = vmatpush1.bf16.msra.mxu0 0
    %362 = vmatprep.subr.bf16.mxu0 0
    %363 = vmatpush1.bf16.msra.mxu0 0
    %364 = vmatprep.subr.bf16.mxu0 0
    %365 = vmatpush1.bf16.msra.mxu0 0
    %366 = vmatprep.subr.bf16.mxu0 0
    %367 = vmatpush1.bf16.msra.mxu0 0
    %368 = vmatprep.mubr.bf16.mxu0 0
    %369 = vmatmul.mubr.bf16.gmra.mrb[0].mxu0 %v313
    %v370 = vpop.f32.mrb[0].mxu0
    %v371 = vadd.f32 %v298, %v370
    %v372 = vpop.f32.mrb[0].mxu0
    %v373 = vpop.f32.mrb[0].mxu0
    %v374 = vadd.f32 %v298, %v373
    %v375 = vpop.f32.mrb[0].mxu0
    %376 = vmatprep.mubr.bf16.mxu0 0
    %377 = vmatmul.mubr.bf16.gmra.mrb[0].mxu0 %v316
    %v378 = vpop.f32.mrb[0].mxu0
    %v379 = vadd.f32 %v298, %v378
    %v380 = vpop.f32.mrb[0].mxu0
    %v381 = vpop.f32.mrb[0].mxu0
    %v382 = vadd.f32 %v298, %v381
    %v383 = vpop.f32.mrb[0].mxu0
    %384 = vmatprep.mubr.bf16.mxu0 0
    %385 = vmatmul.mubr.bf16.gmra.mrb[0].mxu0 %v319
    %v386 = vpop.f32.mrb[0].mxu0
    %v387 = vadd.f32 %v298, %v386
    %v388 = vpop.f32.mrb[0].mxu0
    %v389 = vpop.f32.mrb[0].mxu0
    %v390 = vadd.f32 %v298, %v389
    %v391 = vpop.f32.mrb[0].mxu0
    %392 = vmatprep.mubr.bf16.mxu0 0
    %393 = vmatmul.mubr.bf16.gmra.mrb[0].mxu0 %v322
    %v394 = vpop.f32.mrb[0].mxu0
    %v395 = vadd.f32 %v298, %v394
    %v396 = vpop.f32.mrb[0].mxu0
    %v397 = vpop.f32.mrb[0].mxu0
    %v398 = vadd.f32 %v298, %v397
    %v399 = vpop.f32.mrb[0].mxu0
    %400 = vmatprep.mubr.bf16.mxu0 0
    %401 = vmatmul.mubr.bf16.gmra.mrb[0].mxu0 %v325
    %v402 = vpop.f32.mrb[0].mxu0
    %v403 = vadd.f32 %v298, %v402
    %v404 = vpop.f32.mrb[0].mxu0
    %v405 = vpop.f32.mrb[0].mxu0
    %v406 = vadd.f32 %v298, %v405
    %v407 = vpop.f32.mrb[0].mxu0
    %408 = vmatprep.mubr.bf16.mxu0 0
    %409 = vmatmul.mubr.bf16.gmra.mrb[0].mxu0 %v328
    %v410 = vpop.f32.mrb[0].mxu0
    %v411 = vadd.f32 %v298, %v410
    %v412 = vpop.f32.mrb[0].mxu0
    %v413 = vpop.f32.mrb[0].mxu0
    %v414 = vadd.f32 %v298, %v413
    %v415 = vpop.f32.mrb[0].mxu0
    %416 = vmatprep.mubr.bf16.mxu0 0
    %417 = vmatmul.mubr.bf16.gmra.mrb[0].mxu0 %v331
    %v418 = vpop.f32.mrb[0].mxu0
    %v419 = vadd.f32 %v298, %v418
    %v420 = vpop.f32.mrb[0].mxu0
    %v421 = vpop.f32.mrb[0].mxu0
    %v422 = vadd.f32 %v298, %v421
    %v423 = vpop.f32.mrb[0].mxu0
    %424 = vmatprep.mubr.bf16.mxu0 0
    %425 = vmatmul.mubr.bf16.gmra.mrb[0].mxu0 %v334
    %v426 = vpop.f32.mrb[0].mxu0
    %v427 = vadd.f32 %v298, %v426
    %v428 = vpop.f32.mrb[0].mxu0
    %v429 = vpop.f32.mrb[0].mxu0
    %v430 = vadd.f32 %v298, %v429
    %v431 = vpop.f32.mrb[0].mxu0
    %432 = vdwg.mxu0
    %v433 = vmax.f32 %v371, 0.0
    %v434 = vmax.f32 %v374, 0.0
    %v435 = vmax.f32 %v379, 0.0
    %v436 = vmax.f32 %v382, 0.0
    %v437 = vmax.f32 %v387, 0.0
    %v438 = vmax.f32 %v390, 0.0
    %v439 = vmax.f32 %v395, 0.0
    %v440 = vmax.f32 %v398, 0.0
    %v441 = vmax.f32 %v403, 0.0
    %v442 = vmax.f32 %v406, 0.0
    %v443 = vmax.f32 %v411, 0.0
    %v444 = vmax.f32 %v414, 0.0
    %v445 = vmax.f32 %v419, 0.0
    %v446 = vmax.f32 %v422, 0.0
    %v447 = vmax.f32 %v427, 0.0
    %v448 = vmax.f32 %v430, 0.0
    %v449 = vpack.c.bf16 %v434, %v433
    %v450 = vpack.c.bf16 %v436, %v435
    %v451 = vpack.c.bf16 %v438, %v437
    %v452 = vpack.c.bf16 %v440, %v439
    %v453 = vpack.c.bf16 %v442, %v441
    %v454 = vpack.c.bf16 %v444, %v443
    %v455 = vpack.c.bf16 %v446, %v445
    %v456 = vpack.c.bf16 %v448, %v447
    %v457 = vlaneseq
    %v458 = vshrl.u32 %v457, 7
    %v459 = vsub.s32 1, %v458
    %v460 = vrot.slane %v286, %v459
    %v465 = vunpack.c.l.b16 %v282
    %v466 = vunpack.c.l.b16 %v283
    %v467 = vunpack.c.l.b16 %v284
    %v468 = vunpack.c.l.b16 %v285
    %v469 = vpack.c.b16 %v466, %v465
    %v470 = vpack.c.b16 %v468, %v467
    %v474 = vsel %vm311, %v449, 0
    %v477 = vsel %vm311, %v450, 0
    %v480 = vsel %vm311, %v451, 0
    %v483 = vsel %vm311, %v452, 0
    %v486 = vsel %vm311, %v453, 0
    %v489 = vsel %vm311, %v454, 0
    %v492 = vsel %vm311, %v455, 0
    %v495 = vsel %vm311, %v456, 0
    %497 = vmatprep.subr.bf16.mxu0 0
    %498 = vmatpush1.bf16.msra.mxu0 %v469
    %499 = vmatprep.subr.bf16.mxu0 0
    %500 = vmatpush1.bf16.msra.mxu0 %v470
    %501 = vmatprep.subr.bf16.mxu0 0
    %502 = vmatpush1.bf16.msra.mxu0 0
    %503 = vmatprep.subr.bf16.mxu0 0
    %504 = vmatpush1.bf16.msra.mxu0 0
    %505 = vmatprep.subr.bf16.mxu0 0
    %506 = vmatpush1.bf16.msra.mxu0 0
    %507 = vmatprep.subr.bf16.mxu0 0
    %508 = vmatpush1.bf16.msra.mxu0 0
    %509 = vmatprep.subr.bf16.mxu0 0
    %510 = vmatpush1.bf16.msra.mxu0 0
    %511 = vmatprep.subr.bf16.mxu0 0
    %512 = vmatpush1.bf16.msra.mxu0 0
    %513 = vmatprep.subr.bf16.mxu0 0
    %514 = vmatpush1.bf16.msra.mxu0 0
    %515 = vmatprep.subr.bf16.mxu0 0
    %516 = vmatpush1.bf16.msra.mxu0 0
    %517 = vmatprep.subr.bf16.mxu0 0
    %518 = vmatpush1.bf16.msra.mxu0 0
    %519 = vmatprep.subr.bf16.mxu0 0
    %520 = vmatpush1.bf16.msra.mxu0 0
    %521 = vmatprep.subr.bf16.mxu0 0
    %522 = vmatpush1.bf16.msra.mxu0 0
    %523 = vmatprep.subr.bf16.mxu0 0
    %524 = vmatpush1.bf16.msra.mxu0 0
    %525 = vmatprep.subr.bf16.mxu0 0
    %526 = vmatpush1.bf16.msra.mxu0 0
    %527 = vmatprep.subr.bf16.mxu0 0
    %528 = vmatpush1.bf16.msra.mxu0 0
    %529 = vmatprep.mubr.bf16.mxu0 0
    %530 = vmatmul.mubr.bf16.gmra.mrb[0].mxu0 %v474
    %v531 = vpop.f32.mrb[0].mxu0
    %v532 = vadd.f32 %v460, %v531
    %v533 = vpop.f32.mrb[0].mxu0
    %v534 = vpop.f32.mrb[0].mxu0
    %v535 = vadd.f32 %v460, %v534
    %v536 = vpop.f32.mrb[0].mxu0
    %537 = vmatprep.mubr.bf16.mxu0 0
    %538 = vmatmul.mubr.bf16.gmra.mrb[0].mxu0 %v477
    %v539 = vpop.f32.mrb[0].mxu0
    %v540 = vadd.f32 %v460, %v539
    %v541 = vpop.f32.mrb[0].mxu0
    %v542 = vpop.f32.mrb[0].mxu0
    %v543 = vadd.f32 %v460, %v542
    %v544 = vpop.f32.mrb[0].mxu0
    %545 = vmatprep.mubr.bf16.mxu0 0
    %546 = vmatmul.mubr.bf16.gmra.mrb[0].mxu0 %v480
    %v547 = vpop.f32.mrb[0].mxu0
    %v548 = vadd.f32 %v460, %v547
    %v549 = vpop.f32.mrb[0].mxu0
    %v550 = vpop.f32.mrb[0].mxu0
    %v551 = vadd.f32 %v460, %v550
    %v552 = vpop.f32.mrb[0].mxu0
    %553 = vmatprep.mubr.bf16.mxu0 0
    %554 = vmatmul.mubr.bf16.gmra.mrb[0].mxu0 %v483
    %v555 = vpop.f32.mrb[0].mxu0
    %v556 = vadd.f32 %v460, %v555
    %v557 = vpop.f32.mrb[0].mxu0
    %v558 = vpop.f32.mrb[0].mxu0
    %v559 = vadd.f32 %v460, %v558
    %v560 = vpop.f32.mrb[0].mxu0
    %561 = vmatprep.mubr.bf16.mxu0 0
    %562 = vmatmul.mubr.bf16.gmra.mrb[0].mxu0 %v486
    %v563 = vpop.f32.mrb[0].mxu0
    %v564 = vadd.f32 %v460, %v563
    %v565 = vpop.f32.mrb[0].mxu0
    %v566 = vpop.f32.mrb[0].mxu0
    %v567 = vadd.f32 %v460, %v566
    %v568 = vpop.f32.mrb[0].mxu0
    %569 = vmatprep.mubr.bf16.mxu0 0
    %570 = vmatmul.mubr.bf16.gmra.mrb[0].mxu0 %v489
    %v571 = vpop.f32.mrb[0].mxu0
    %v572 = vadd.f32 %v460, %v571
    %v573 = vpop.f32.mrb[0].mxu0
    %v574 = vpop.f32.mrb[0].mxu0
    %v575 = vadd.f32 %v460, %v574
    %v576 = vpop.f32.mrb[0].mxu0
    %577 = vmatprep.mubr.bf16.mxu0 0
    %578 = vmatmul.mubr.bf16.gmra.mrb[0].mxu0 %v492
    %v579 = vpop.f32.mrb[0].mxu0
    %v580 = vadd.f32 %v460, %v579
    %v581 = vpop.f32.mrb[0].mxu0
    %v582 = vpop.f32.mrb[0].mxu0
    %v583 = vadd.f32 %v460, %v582
    %v584 = vpop.f32.mrb[0].mxu0
    %585 = vmatprep.mubr.bf16.mxu0 0
    %586 = vmatmul.mubr.bf16.gmra.mrb[0].mxu0 %v495
    %v587 = vpop.f32.mrb[0].mxu0
    %v588 = vadd.f32 %v460, %v587
    %v589 = vpop.f32.mrb[0].mxu0
    %v590 = vpop.f32.mrb[0].mxu0
    %v591 = vadd.f32 %v460, %v590
    %v592 = vpop.f32.mrb[0].mxu0
    %593 = vdwg.mxu0
    %v594 = vmax.f32 %v532, 0.0
    %v595 = vmax.f32 %v535, 0.0
    %v596 = vmax.f32 %v540, 0.0
    %v597 = vmax.f32 %v543, 0.0
    %v598 = vmax.f32 %v548, 0.0
    %v599 = vmax.f32 %v551, 0.0
    %v600 = vmax.f32 %v556, 0.0
    %v601 = vmax.f32 %v559, 0.0
    %v602 = vmax.f32 %v564, 0.0
    %v603 = vmax.f32 %v567, 0.0
    %v604 = vmax.f32 %v572, 0.0
    %v605 = vmax.f32 %v575, 0.0
    %v606 = vmax.f32 %v580, 0.0
    %v607 = vmax.f32 %v583, 0.0
    %v608 = vmax.f32 %v588, 0.0
    %v609 = vmax.f32 %v591, 0.0
    %v610 = vmul.f32 %v594, %v594
    %v611 = vmul.f32 %v595, %v595
    %v612 = vmul.f32 %v596, %v596
    %v613 = vmul.f32 %v597, %v597
    %v614 = vmul.f32 %v598, %v598
    %v615 = vmul.f32 %v599, %v599
    %v616 = vmul.f32 %v600, %v600
    %v617 = vmul.f32 %v601, %v601
    %v618 = vmul.f32 %v602, %v602
    %v619 = vmul.f32 %v603, %v603
    %v620 = vmul.f32 %v604, %v604
    %v621 = vmul.f32 %v605, %v605
    %v622 = vmul.f32 %v606, %v606
    %v623 = vmul.f32 %v607, %v607
    %v624 = vmul.f32 %v608, %v608
    %v625 = vmul.f32 %v609, %v609
    %642 = vrot.lane.b32.xlu0 %v610, 32
    %v643 = vpop.permute.xlu0 %642
    %644 = vrot.lane.b32.xlu0 %v611, 32
    %v645 = vpop.permute.xlu0 %644
    %646 = vrot.lane.b32.xlu0 %v612, 32
    %v647 = vpop.permute.xlu0 %646
    %648 = vrot.lane.b32.xlu0 %v613, 32
    %v649 = vpop.permute.xlu0 %648
    %650 = vrot.lane.b32.xlu0 %v614, 32
    %v651 = vpop.permute.xlu0 %650
    %652 = vrot.lane.b32.xlu0 %v615, 32
    %v653 = vpop.permute.xlu0 %652
    %654 = vrot.lane.b32.xlu0 %v616, 32
    %v655 = vpop.permute.xlu0 %654
    %656 = vrot.lane.b32.xlu0 %v617, 32
    %v657 = vpop.permute.xlu0 %656
    %658 = vrot.lane.b32.xlu0 %v618, 32
    %v659 = vpop.permute.xlu0 %658
    %660 = vrot.lane.b32.xlu0 %v619, 32
    %v661 = vpop.permute.xlu0 %660
    %662 = vrot.lane.b32.xlu0 %v620, 32
    %v663 = vpop.permute.xlu0 %662
    %664 = vrot.lane.b32.xlu0 %v621, 32
    %v665 = vpop.permute.xlu0 %664
    %666 = vrot.lane.b32.xlu0 %v622, 32
    %v667 = vpop.permute.xlu0 %666
    %668 = vrot.lane.b32.xlu0 %v623, 32
    %v669 = vpop.permute.xlu0 %668
    %670 = vrot.lane.b32.xlu0 %v624, 32
    %v671 = vpop.permute.xlu0 %670
    %672 = vrot.lane.b32.xlu0 %v625, 32
    %v673 = vpop.permute.xlu0 %672
    %v690 = vsel %vm311, %v594, %v643
    %v691 = vsel %vm311, %v595, %v645
    %v692 = vsel %vm311, %v596, %v647
    %v693 = vsel %vm311, %v597, %v649
    %v694 = vsel %vm311, %v598, %v651
    %v695 = vsel %vm311, %v599, %v653
    %v696 = vsel %vm311, %v600, %v655
    %v697 = vsel %vm311, %v601, %v657
    %v698 = vsel %vm311, %v602, %v659
    %v699 = vsel %vm311, %v603, %v661
    %v700 = vsel %vm311, %v604, %v663
    %v701 = vsel %vm311, %v605, %v665
    %v702 = vsel %vm311, %v606, %v667
    %v703 = vsel %vm311, %v607, %v669
    %v704 = vsel %vm311, %v608, %v671
    %v705 = vsel %vm311, %v609, %v673
    %706 = vmatprep.subr.mxu0 0.0
    %707 = vmatpush1.msra.mxu0 %v690
    %708 = vmatprep.subr.mxu0 0.0
    %709 = vmatpush1.msra.mxu0 %v691
    %710 = vmatprep.subr.mxu0 0.0
    %711 = vmatpush1.msra.mxu0 %v692
    %712 = vmatprep.subr.mxu0 0.0
    %713 = vmatpush1.msra.mxu0 %v693
    %714 = vmatprep.subr.mxu0 0.0
    %715 = vmatpush1.msra.mxu0 %v694
    %716 = vmatprep.subr.mxu0 0.0
    %717 = vmatpush1.msra.mxu0 %v695
    %718 = vmatprep.subr.mxu0 0.0
    %719 = vmatpush1.msra.mxu0 %v696
    %720 = vmatprep.subr.mxu0 0.0
    %721 = vmatpush1.msra.mxu0 %v697
    %722 = vmatprep.subr.mxu0 0.0
    %723 = vmatpush1.msra.mxu0 %v698
    %724 = vmatprep.subr.mxu0 0.0
    %725 = vmatpush1.msra.mxu0 %v699
    %726 = vmatprep.subr.mxu0 0.0
    %727 = vmatpush1.msra.mxu0 %v700
    %728 = vmatprep.subr.mxu0 0.0
    %729 = vmatpush1.msra.mxu0 %v701
    %730 = vmatprep.subr.mxu0 0.0
    %731 = vmatpush1.msra.mxu0 %v702
    %732 = vmatprep.subr.mxu0 0.0
    %733 = vmatpush1.msra.mxu0 %v703
    %734 = vmatprep.subr.mxu0 0.0
    %735 = vmatpush1.msra.mxu0 %v704
    %736 = vmatprep.subr.mxu0 0.0
    %737 = vmatpush1.msra.mxu0 %v705
    %738 = vmatprep.subr.mxu0 0.0
    %739 = vmatpush1.msra.mxu0 0.0
    %740 = vmatprep.subr.mxu0 0.0
    %741 = vmatpush1.msra.mxu0 0.0
    %742 = vmatprep.subr.mxu0 0.0
    %743 = vmatpush1.msra.mxu0 0.0
    %744 = vmatprep.subr.mxu0 0.0
    %745 = vmatpush1.msra.mxu0 0.0
    %746 = vmatprep.subr.mxu0 0.0
    %747 = vmatpush1.msra.mxu0 0.0
    %748 = vmatprep.subr.mxu0 0.0
    %749 = vmatpush1.msra.mxu0 0.0
    %750 = vmatprep.subr.mxu0 0.0
    %751 = vmatpush1.msra.mxu0 0.0
    %752 = vmatprep.subr.mxu0 0.0
    %753 = vmatpush1.msra.mxu0 0.0
    %754 = vmatprep.subr.mxu0 0.0
    %755 = vmatpush1.msra.mxu0 0.0
    %756 = vmatprep.subr.mxu0 0.0
    %757 = vmatpush1.msra.mxu0 0.0
    %758 = vmatprep.subr.mxu0 0.0
    %759 = vmatpush1.msra.mxu0 0.0
    %760 = vmatprep.subr.mxu0 0.0
    %761 = vmatpush1.msra.mxu0 0.0
    %762 = vmatprep.subr.mxu0 0.0
    %763 = vmatpush1.msra.mxu0 0.0
    %764 = vmatprep.subr.mxu0 0.0
    %765 = vmatpush1.msra.mxu0 0.0
    %766 = vmatprep.subr.mxu0 0.0
    %767 = vmatpush1.msra.mxu0 0.0
    %768 = vmatprep.subr.mxu0 0.0
    %769 = vmatpush1.msra.mxu0 0.0
    %770 = vmatprep.mubr.f32.mxu0 0.0
    %771 = vmatmul.mubr.f32.gmra.mrb[0].mxu0 %v96
    %v772 = vpop.f32.mrb[0].mxu0
    %v773 = vadd.f32 0.0, %v772
    %v774 = vpop.f32.mrb[0].mxu0
    %775 = vdwg.mxu0
    %v776 = vmul.f32 %v773, 0.0625
    %v777 = vmul.f32 %v776, %v776
    %779 = vrot.lane.b32.xlu0 %v777, 32
    %v780 = vpop.permute.xlu0 %779
    %v782 = vsub.f32 %v776, %v780
    %v783 = vmax.f32 %v782, 0.0
    %v784 = vadd.f32 %v783, 1e-05
    %v785 = vrsqrt.pop %v784
    %v787 = vrot.slane %v785, 6
    %788 = vrot.lane.b32.xlu0 %v787, 96
    %v789 = vpop.permute.xlu0 %788
    %v791 = vmul.f32 %v286, %v789
    %v793 = vrot.slane %v791, 2
    %v795 = vmul.f32 %v776, %v793
    %v797 = vrot.slane %v795, 5
    %v799 = vsub.f32 %v286, %v797
    %v800 = vlaneseq
    %v801 = vshrl.u32 %v800, 7
    %v802 = vsub.s32 2, %v801
    %v803 = vrot.slane %v791, %v802
    %v804 = vmul.f32 %v594, %v803
    %v805 = vmul.f32 %v595, %v803
    %v806 = vmul.f32 %v596, %v803
    %v807 = vmul.f32 %v597, %v803
    %v808 = vmul.f32 %v598, %v803
    %v809 = vmul.f32 %v599, %v803
    %v810 = vmul.f32 %v600, %v803
    %v811 = vmul.f32 %v601, %v803
    %v812 = vmul.f32 %v602, %v803
    %v813 = vmul.f32 %v603, %v803
    %v814 = vmul.f32 %v604, %v803
    %v815 = vmul.f32 %v605, %v803
    %v816 = vmul.f32 %v606, %v803
    %v817 = vmul.f32 %v607, %v803
    %v818 = vmul.f32 %v608, %v803
    %v819 = vmul.f32 %v609, %v803
    %v820 = vlaneseq
    %v821 = vshrl.u32 %v820, 7
    %v822 = vsub.s32 3, %v821
    %v823 = vrot.slane %v799, %v822
    %v824 = vadd.f32 %v804, %v823
    %v825 = vadd.f32 %v805, %v823
    %v826 = vadd.f32 %v806, %v823
    %v827 = vadd.f32 %v807, %v823
    %v828 = vadd.f32 %v808, %v823
    %v829 = vadd.f32 %v809, %v823
    %v830 = vadd.f32 %v810, %v823
    %v831 = vadd.f32 %v811, %v823
    %v832 = vadd.f32 %v812, %v823
    %v833 = vadd.f32 %v813, %v823
    %v834 = vadd.f32 %v814, %v823
    %v835 = vadd.f32 %v815, %v823
    %v836 = vadd.f32 %v816, %v823
    %v837 = vadd.f32 %v817, %v823
    %v838 = vadd.f32 %v818, %v823
    %v839 = vadd.f32 %v819, %v823
    %v840 = vmax.f32 %v824, 0.0
    %v841 = vmax.f32 %v825, 0.0
    %v842 = vmax.f32 %v826, 0.0
    %v843 = vmax.f32 %v827, 0.0
    %v844 = vmax.f32 %v828, 0.0
    %v845 = vmax.f32 %v829, 0.0
    %v846 = vmax.f32 %v830, 0.0
    %v847 = vmax.f32 %v831, 0.0
    %v848 = vmax.f32 %v832, 0.0
    %v849 = vmax.f32 %v833, 0.0
    %v850 = vmax.f32 %v834, 0.0
    %v851 = vmax.f32 %v835, 0.0
    %v852 = vmax.f32 %v836, 0.0
    %v853 = vmax.f32 %v837, 0.0
    %v854 = vmax.f32 %v838, 0.0
    %v855 = vmax.f32 %v839, 0.0
    %v856 = vpack.c.bf16 %v841, %v840
    %v857 = vpack.c.bf16 %v843, %v842
    %v858 = vpack.c.bf16 %v845, %v844
    %v859 = vpack.c.bf16 %v847, %v846
    %v860 = vpack.c.bf16 %v849, %v848
    %v861 = vpack.c.bf16 %v851, %v850
    %v862 = vpack.c.bf16 %v853, %v852
    %v863 = vpack.c.bf16 %v855, %v854
    %s864 = sld [smem:[#allocation2 + $0x1]]
    %865 = vmatprep.subr.bf16.mxu0 0
    %866 = vmatpush1.bf16.msra.mxu0 %v856
    %867 = vmatprep.subr.bf16.mxu0 0
    %868 = vmatpush1.bf16.msra.mxu0 %v857
    %869 = vmatprep.subr.bf16.mxu0 0
    %870 = vmatpush1.bf16.msra.mxu0 %v858
    %871 = vmatprep.subr.bf16.mxu0 0
    %872 = vmatpush1.bf16.msra.mxu0 %v859
    %873 = vmatprep.subr.bf16.mxu0 0
    %874 = vmatpush1.bf16.msra.mxu0 %v860
    %875 = vmatprep.subr.bf16.mxu0 0
    %876 = vmatpush1.bf16.msra.mxu0 %v861
    %877 = vmatprep.subr.bf16.mxu0 0
    %878 = vmatpush1.bf16.msra.mxu0 %v862
    %879 = vmatprep.subr.bf16.mxu0 0
    %880 = vmatpush1.bf16.msra.mxu0 %v863
    %881 = vmatprep.subr.bf16.mxu0 0
    %882 = vmatpush1.bf16.msra.mxu0 0
    %883 = vmatprep.subr.bf16.mxu0 0
    %884 = vmatpush1.bf16.msra.mxu0 0
    %885 = vmatprep.subr.bf16.mxu0 0
    %886 = vmatpush1.bf16.msra.mxu0 0
    %887 = vmatprep.subr.bf16.mxu0 0
    %888 = vmatpush1.bf16.msra.mxu0 0
    %889 = vmatprep.subr.bf16.mxu0 0
    %890 = vmatpush1.bf16.msra.mxu0 0
    %891 = vmatprep.subr.bf16.mxu0 0
    %892 = vmatpush1.bf16.msra.mxu0 0
    %893 = vmatprep.subr.bf16.mxu0 0
    %894 = vmatpush1.bf16.msra.mxu0 0
    %895 = vmatprep.subr.bf16.mxu0 0
    %896 = vmatpush1.bf16.msra.mxu0 0
    %897 = vmatprep.mubr.bf16.mxu0 0
    %898 = vmatmul.mubr.bf16.gmra.mrb[0].mxu0 %v130
    %v899 = vpop.f32.mrb[0].mxu0
    %v900 = vadd.f32 0.0, %v899
    %v901 = vpop.f32.mrb[0].mxu0
    %v902 = vpop.f32.mrb[0].mxu0
    %v903 = vadd.f32 0.0, %v902
    %v904 = vpop.f32.mrb[0].mxu0
    %905 = vmatprep.mubr.bf16.mxu0 0
    %906 = vmatmul.mubr.bf16.gmra.mrb[0].mxu0 %v131
    %v907 = vpop.f32.mrb[0].mxu0
    %v908 = vadd.f32 0.0, %v907
    %v909 = vpop.f32.mrb[0].mxu0
    %v910 = vpop.f32.mrb[0].mxu0
    %v911 = vadd.f32 0.0, %v910
    %v912 = vpop.f32.mrb[0].mxu0
    %913 = vmatprep.mubr.bf16.mxu0 0
    %914 = vmatmul.mubr.bf16.gmra.mrb[0].mxu0 %v132
    %v915 = vpop.f32.mrb[0].mxu0
    %v916 = vadd.f32 0.0, %v915
    %v917 = vpop.f32.mrb[0].mxu0
    %v918 = vpop.f32.mrb[0].mxu0
    %v919 = vadd.f32 0.0, %v918
    %v920 = vpop.f32.mrb[0].mxu0
    %921 = vmatprep.mubr.bf16.mxu0 0
    %922 = vmatmul.mubr.bf16.gmra.mrb[0].mxu0 %v133
    %v923 = vpop.f32.mrb[0].mxu0
    %v924 = vadd.f32 0.0, %v923
    %v925 = vpop.f32.mrb[0].mxu0
    %v926 = vpop.f32.mrb[0].mxu0
    %v927 = vadd.f32 0.0, %v926
    %v928 = vpop.f32.mrb[0].mxu0
    %929 = vmatprep.mubr.bf16.mxu0 0
    %930 = vmatmul.mubr.bf16.gmra.mrb[0].mxu0 %v134
    %v931 = vpop.f32.mrb[0].mxu0
    %v932 = vadd.f32 0.0, %v931
    %v933 = vpop.f32.mrb[0].mxu0
    %v934 = vpop.f32.mrb[0].mxu0
    %v935 = vadd.f32 0.0, %v934
    %v936 = vpop.f32.mrb[0].mxu0
    %937 = vmatprep.mubr.bf16.mxu0 0
    %938 = vmatmul.mubr.bf16.gmra.mrb[0].mxu0 %v135
    %v939 = vpop.f32.mrb[0].mxu0
    %v940 = vadd.f32 0.0, %v939
    %v941 = vpop.f32.mrb[0].mxu0
    %v942 = vpop.f32.mrb[0].mxu0
    %v943 = vadd.f32 0.0, %v942
    %v944 = vpop.f32.mrb[0].mxu0
    %945 = vmatprep.mubr.bf16.mxu0 0
    %946 = vmatmul.mubr.bf16.gmra.mrb[0].mxu0 %v136
    %v947 = vpop.f32.mrb[0].mxu0
    %v948 = vadd.f32 0.0, %v947
    %v949 = vpop.f32.mrb[0].mxu0
    %v950 = vpop.f32.mrb[0].mxu0
    %v951 = vadd.f32 0.0, %v950
    %v952 = vpop.f32.mrb[0].mxu0
    %953 = vmatprep.mubr.bf16.mxu0 0
    %954 = vmatmul.mubr.bf16.gmra.mrb[0].mxu0 %v137
    %v955 = vpop.f32.mrb[0].mxu0
    %v956 = vadd.f32 0.0, %v955
    %v957 = vpop.f32.mrb[0].mxu0
    %v958 = vpop.f32.mrb[0].mxu0
    %v959 = vadd.f32 0.0, %v958
    %v960 = vpop.f32.mrb[0].mxu0
    %961 = vdwg.mxu0
    %s962 = sadd.f32 %s864, 1.0
    %v963 = vstv %s962
    %v964 = vmul.f32 %v963, %v840
    %v965 = vmul.f32 %v963, %v841
    %v966 = vmul.f32 %v963, %v842
    %v967 = vmul.f32 %v963, %v843
    %v968 = vmul.f32 %v963, %v844
    %v969 = vmul.f32 %v963, %v845
    %v970 = vmul.f32 %v963, %v846
    %v971 = vmul.f32 %v963, %v847
    %v972 = vmul.f32 %v963, %v848
    %v973 = vmul.f32 %v963, %v849
    %v974 = vmul.f32 %v963, %v850
    %v975 = vmul.f32 %v963, %v851
    %v976 = vmul.f32 %v963, %v852
    %v977 = vmul.f32 %v963, %v853
    %v978 = vmul.f32 %v963, %v854
    %v979 = vmul.f32 %v963, %v855
    %v980 = vadd.f32 %v964, %v900
    %v981 = vadd.f32 %v965, %v903
    %v982 = vadd.f32 %v966, %v908
    %v983 = vadd.f32 %v967, %v911
    %v984 = vadd.f32 %v968, %v916
    %v985 = vadd.f32 %v969, %v919
    %v986 = vadd.f32 %v970, %v924
    %v987 = vadd.f32 %v971, %v927
    %v988 = vadd.f32 %v972, %v932
    %v989 = vadd.f32 %v973, %v935
    %v990 = vadd.f32 %v974, %v940
    %v991 = vadd.f32 %v975, %v943
    %v992 = vadd.f32 %v976, %v948
    %v993 = vadd.f32 %v977, %v951
    %v994 = vadd.f32 %v978, %v956
    %v995 = vadd.f32 %v979, %v959
    %s996 = scalar_lea.vmem %s3, 32
    %v997 = vld [vmem:[%s996] sm:$0xf]
    %v998 = vld [vmem:[%s996 + $0x4] sm:$0xf]
    %v999 = vld [vmem:[%s996 + $0x8] sm:$0xf]
    %v1000 = vld [vmem:[%s996 + $0xc] sm:$0xf]
    %s1001 = scalar_lea.vmem %s3, 48
    %v1002 = vld [vmem:[%s1001] sm:$0xf]
    %v1003 = vld [vmem:[%s1001 + $0x4] sm:$0xf]
    %v1004 = vld [vmem:[%s1001 + $0x8] sm:$0xf]
    %v1005 = vld [vmem:[%s1001 + $0xc] sm:$0xf]
    %s1006 = scalar_lea.vmem [#allocation6], 8
    %v1007 = vld [vmem:[%s1006] sm:$0xff]
    %v1008 = vpack.c.bf16 %v981, %v980
    %v1009 = vpack.c.bf16 %v983, %v982
    %v1010 = vpack.c.bf16 %v985, %v984
    %v1011 = vpack.c.bf16 %v987, %v986
    %v1012 = vpack.c.bf16 %v989, %v988
    %v1013 = vpack.c.bf16 %v991, %v990
    %v1014 = vpack.c.bf16 %v993, %v992
    %v1015 = vpack.c.bf16 %v995, %v994
    %v1016 = vlaneseq
    %v1017 = vshrl.u32 %v1016, 7
    %v1018 = vsub.s32 0, %v1017
    %v1019 = vrot.slane %v1007, %v1018
    %v1024 = vunpack.c.l.b16 %v997
    %v1025 = vunpack.c.l.b16 %v998
    %v1026 = vunpack.c.l.b16 %v999
    %v1027 = vunpack.c.l.b16 %v1000
    %v1028 = vpack.c.b16 %v1025, %v1024
    %v1029 = vpack.c.b16 %v1027, %v1026
    %v1033 = vsel %vm311, %v1008, 0
    %v1036 = vsel %vm311, %v1009, 0
    %v1039 = vsel %vm311, %v1010, 0
    %v1042 = vsel %vm311, %v1011, 0
    %v1045 = vsel %vm311, %v1012, 0
    %v1048 = vsel %vm311, %v1013, 0
    %v1051 = vsel %vm311, %v1014, 0
    %v1054 = vsel %vm311, %v1015, 0
    %1056 = vmatprep.subr.bf16.mxu0 0
    %1057 = vmatpush1.bf16.msra.mxu0 %v1028
    %1058 = vmatprep.subr.bf16.mxu0 0
    %1059 = vmatpush1.bf16.msra.mxu0 %v1029
    %1060 = vmatprep.subr.bf16.mxu0 0
    %1061 = vmatpush1.bf16.msra.mxu0 0
    %1062 = vmatprep.subr.bf16.mxu0 0
    %1063 = vmatpush1.bf16.msra.mxu0 0
    %1064 = vmatprep.subr.bf16.mxu0 0
    %1065 = vmatpush1.bf16.msra.mxu0 0
    %1066 = vmatprep.subr.bf16.mxu0 0
    %1067 = vmatpush1.bf16.msra.mxu0 0
    %1068 = vmatprep.subr.bf16.mxu0 0
    %1069 = vmatpush1.bf16.msra.mxu0 0
    %1070 = vmatprep.subr.bf16.mxu0 0
    %1071 = vmatpush1.bf16.msra.mxu0 0
    %1072 = vmatprep.subr.bf16.mxu0 0
    %1073 = vmatpush1.bf16.msra.mxu0 0
    %1074 = vmatprep.subr.bf16.mxu0 0
    %1075 = vmatpush1.bf16.msra.mxu0 0
    %1076 = vmatprep.subr.bf16.mxu0 0
    %1077 = vmatpush1.bf16.msra.mxu0 0
    %1078 = vmatprep.subr.bf16.mxu0 0
    %1079 = vmatpush1.bf16.msra.mxu0 0
    %1080 = vmatprep.subr.bf16.mxu0 0
    %1081 = vmatpush1.bf16.msra.mxu0 0
    %1082 = vmatprep.subr.bf16.mxu0 0
    %1083 = vmatpush1.bf16.msra.mxu0 0
    %1084 = vmatprep.subr.bf16.mxu0 0
    %1085 = vmatpush1.bf16.msra.mxu0 0
    %1086 = vmatprep.subr.bf16.mxu0 0
    %1087 = vmatpush1.bf16.msra.mxu0 0
    %1088 = vmatprep.mubr.bf16.mxu0 0
    %1089 = vmatmul.mubr.bf16.gmra.mrb[0].mxu0 %v1033
    %v1090 = vpop.f32.mrb[0].mxu0
    %v1091 = vadd.f32 %v1019, %v1090
    %v1092 = vpop.f32.mrb[0].mxu0
    %v1093 = vpop.f32.mrb[0].mxu0
    %v1094 = vadd.f32 %v1019, %v1093
    %v1095 = vpop.f32.mrb[0].mxu0
    %1096 = vmatprep.mubr.bf16.mxu0 0
    %1097 = vmatmul.mubr.bf16.gmra.mrb[0].mxu0 %v1036
    %v1098 = vpop.f32.mrb[0].mxu0
    %v1099 = vadd.f32 %v1019, %v1098
    %v1100 = vpop.f32.mrb[0].mxu0
    %v1101 = vpop.f32.mrb[0].mxu0
    %v1102 = vadd.f32 %v1019, %v1101
    %v1103 = vpop.f32.mrb[0].mxu0
    %1104 = vmatprep.mubr.bf16.mxu0 0
    %1105 = vmatmul.mubr.bf16.gmra.mrb[0].mxu0 %v1039
    %v1106 = vpop.f32.mrb[0].mxu0
    %v1107 = vadd.f32 %v1019, %v1106
    %v1108 = vpop.f32.mrb[0].mxu0
    %v1109 = vpop.f32.mrb[0].mxu0
    %v1110 = vadd.f32 %v1019, %v1109
    %v1111 = vpop.f32.mrb[0].mxu0
    %1112 = vmatprep.mubr.bf16.mxu0 0
    %1113 = vmatmul.mubr.bf16.gmra.mrb[0].mxu0 %v1042
    %v1114 = vpop.f32.mrb[0].mxu0
    %v1115 = vadd.f32 %v1019, %v1114
    %v1116 = vpop.f32.mrb[0].mxu0
    %v1117 = vpop.f32.mrb[0].mxu0
    %v1118 = vadd.f32 %v1019, %v1117
    %v1119 = vpop.f32.mrb[0].mxu0
    %1120 = vmatprep.mubr.bf16.mxu0 0
    %1121 = vmatmul.mubr.bf16.gmra.mrb[0].mxu0 %v1045
    %v1122 = vpop.f32.mrb[0].mxu0
    %v1123 = vadd.f32 %v1019, %v1122
    %v1124 = vpop.f32.mrb[0].mxu0
    %v1125 = vpop.f32.mrb[0].mxu0
    %v1126 = vadd.f32 %v1019, %v1125
    %v1127 = vpop.f32.mrb[0].mxu0
    %1128 = vmatprep.mubr.bf16.mxu0 0
    %1129 = vmatmul.mubr.bf16.gmra.mrb[0].mxu0 %v1048
    %v1130 = vpop.f32.mrb[0].mxu0
    %v1131 = vadd.f32 %v1019, %v1130
    %v1132 = vpop.f32.mrb[0].mxu0
    %v1133 = vpop.f32.mrb[0].mxu0
    %v1134 = vadd.f32 %v1019, %v1133
    %v1135 = vpop.f32.mrb[0].mxu0
    %1136 = vmatprep.mubr.bf16.mxu0 0
    %1137 = vmatmul.mubr.bf16.gmra.mrb[0].mxu0 %v1051
    %v1138 = vpop.f32.mrb[0].mxu0
    %v1139 = vadd.f32 %v1019, %v1138
    %v1140 = vpop.f32.mrb[0].mxu0
    %v1141 = vpop.f32.mrb[0].mxu0
    %v1142 = vadd.f32 %v1019, %v1141
    %v1143 = vpop.f32.mrb[0].mxu0
    %1144 = vmatprep.mubr.bf16.mxu0 0
    %1145 = vmatmul.mubr.bf16.gmra.mrb[0].mxu0 %v1054
    %v1146 = vpop.f32.mrb[0].mxu0
    %v1147 = vadd.f32 %v1019, %v1146
    %v1148 = vpop.f32.mrb[0].mxu0
    %v1149 = vpop.f32.mrb[0].mxu0
    %v1150 = vadd.f32 %v1019, %v1149
    %v1151 = vpop.f32.mrb[0].mxu0
    %1152 = vdwg.mxu0
    %v1153 = vmax.f32 %v1091, 0.0
    %v1154 = vmax.f32 %v1094, 0.0
    %v1155 = vmax.f32 %v1099, 0.0
    %v1156 = vmax.f32 %v1102, 0.0
    %v1157 = vmax.f32 %v1107, 0.0
    %v1158 = vmax.f32 %v1110, 0.0
    %v1159 = vmax.f32 %v1115, 0.0
    %v1160 = vmax.f32 %v1118, 0.0
    %v1161 = vmax.f32 %v1123, 0.0
    %v1162 = vmax.f32 %v1126, 0.0
    %v1163 = vmax.f32 %v1131, 0.0
    %v1164 = vmax.f32 %v1134, 0.0
    %v1165 = vmax.f32 %v1139, 0.0
    %v1166 = vmax.f32 %v1142, 0.0
    %v1167 = vmax.f32 %v1147, 0.0
    %v1168 = vmax.f32 %v1150, 0.0
    %v1169 = vpack.c.bf16 %v1154, %v1153
    %v1170 = vpack.c.bf16 %v1156, %v1155
    %v1171 = vpack.c.bf16 %v1158, %v1157
    %v1172 = vpack.c.bf16 %v1160, %v1159
    %v1173 = vpack.c.bf16 %v1162, %v1161
    %v1174 = vpack.c.bf16 %v1164, %v1163
    %v1175 = vpack.c.bf16 %v1166, %v1165
    %v1176 = vpack.c.bf16 %v1168, %v1167
    %v1177 = vlaneseq
    %v1178 = vshrl.u32 %v1177, 7
    %v1179 = vsub.s32 1, %v1178
    %v1180 = vrot.slane %v1007, %v1179
    %v1185 = vunpack.c.l.b16 %v1002
    %v1186 = vunpack.c.l.b16 %v1003
    %v1187 = vunpack.c.l.b16 %v1004
    %v1188 = vunpack.c.l.b16 %v1005
    %v1189 = vpack.c.b16 %v1186, %v1185
    %v1190 = vpack.c.b16 %v1188, %v1187
    %v1194 = vsel %vm311, %v1169, 0
    %v1197 = vsel %vm311, %v1170, 0
    %v1200 = vsel %vm311, %v1171, 0
    %v1203 = vsel %vm311, %v1172, 0
    %v1206 = vsel %vm311, %v1173, 0
    %v1209 = vsel %vm311, %v1174, 0
    %v1212 = vsel %vm311, %v1175, 0
    %v1215 = vsel %vm311, %v1176, 0
    %1217 = vmatprep.subr.bf16.mxu0 0
    %1218 = vmatpush1.bf16.msra.mxu0 %v1189
    %1219 = vmatprep.subr.bf16.mxu0 0
    %1220 = vmatpush1.bf16.msra.mxu0 %v1190
    %1221 = vmatprep.subr.bf16.mxu0 0
    %1222 = vmatpush1.bf16.msra.mxu0 0
    %1223 = vmatprep.subr.bf16.mxu0 0
    %1224 = vmatpush1.bf16.msra.mxu0 0
    %1225 = vmatprep.subr.bf16.mxu0 0
    %1226 = vmatpush1.bf16.msra.mxu0 0
    %1227 = vmatprep.subr.bf16.mxu0 0
    %1228 = vmatpush1.bf16.msra.mxu0 0
    %1229 = vmatprep.subr.bf16.mxu0 0
    %1230 = vmatpush1.bf16.msra.mxu0 0
    %1231 = vmatprep.subr.bf16.mxu0 0
    %1232 = vmatpush1.bf16.msra.mxu0 0
    %1233 = vmatprep.subr.bf16.mxu0 0
    %1234 = vmatpush1.bf16.msra.mxu0 0
    %1235 = vmatprep.subr.bf16.mxu0 0
    %1236 = vmatpush1.bf16.msra.mxu0 0
    %1237 = vmatprep.subr.bf16.mxu0 0
    %1238 = vmatpush1.bf16.msra.mxu0 0
    %1239 = vmatprep.subr.bf16.mxu0 0
    %1240 = vmatpush1.bf16.msra.mxu0 0
    %1241 = vmatprep.subr.bf16.mxu0 0
    %1242 = vmatpush1.bf16.msra.mxu0 0
    %1243 = vmatprep.subr.bf16.mxu0 0
    %1244 = vmatpush1.bf16.msra.mxu0 0
    %1245 = vmatprep.subr.bf16.mxu0 0
    %1246 = vmatpush1.bf16.msra.mxu0 0
    %1247 = vmatprep.subr.bf16.mxu0 0
    %1248 = vmatpush1.bf16.msra.mxu0 0
    %1249 = vmatprep.mubr.bf16.mxu0 0
    %1250 = vmatmul.mubr.bf16.gmra.mrb[0].mxu0 %v1194
    %v1251 = vpop.f32.mrb[0].mxu0
    %v1252 = vadd.f32 %v1180, %v1251
    %v1253 = vpop.f32.mrb[0].mxu0
    %v1254 = vpop.f32.mrb[0].mxu0
    %v1255 = vadd.f32 %v1180, %v1254
    %v1256 = vpop.f32.mrb[0].mxu0
    %1257 = vmatprep.mubr.bf16.mxu0 0
    %1258 = vmatmul.mubr.bf16.gmra.mrb[0].mxu0 %v1197
    %v1259 = vpop.f32.mrb[0].mxu0
    %v1260 = vadd.f32 %v1180, %v1259
    %v1261 = vpop.f32.mrb[0].mxu0
    %v1262 = vpop.f32.mrb[0].mxu0
    %v1263 = vadd.f32 %v1180, %v1262
    %v1264 = vpop.f32.mrb[0].mxu0
    %1265 = vmatprep.mubr.bf16.mxu0 0
    %1266 = vmatmul.mubr.bf16.gmra.mrb[0].mxu0 %v1200
    %v1267 = vpop.f32.mrb[0].mxu0
    %v1268 = vadd.f32 %v1180, %v1267
    %v1269 = vpop.f32.mrb[0].mxu0
    %v1270 = vpop.f32.mrb[0].mxu0
    %v1271 = vadd.f32 %v1180, %v1270
    %v1272 = vpop.f32.mrb[0].mxu0
    %1273 = vmatprep.mubr.bf16.mxu0 0
    %1274 = vmatmul.mubr.bf16.gmra.mrb[0].mxu0 %v1203
    %v1275 = vpop.f32.mrb[0].mxu0
    %v1276 = vadd.f32 %v1180, %v1275
    %v1277 = vpop.f32.mrb[0].mxu0
    %v1278 = vpop.f32.mrb[0].mxu0
    %v1279 = vadd.f32 %v1180, %v1278
    %v1280 = vpop.f32.mrb[0].mxu0
    %1281 = vmatprep.mubr.bf16.mxu0 0
    %1282 = vmatmul.mubr.bf16.gmra.mrb[0].mxu0 %v1206
    %v1283 = vpop.f32.mrb[0].mxu0
    %v1284 = vadd.f32 %v1180, %v1283
    %v1285 = vpop.f32.mrb[0].mxu0
    %v1286 = vpop.f32.mrb[0].mxu0
    %v1287 = vadd.f32 %v1180, %v1286
    %v1288 = vpop.f32.mrb[0].mxu0
    %1289 = vmatprep.mubr.bf16.mxu0 0
    %1290 = vmatmul.mubr.bf16.gmra.mrb[0].mxu0 %v1209
    %v1291 = vpop.f32.mrb[0].mxu0
    %v1292 = vadd.f32 %v1180, %v1291
    %v1293 = vpop.f32.mrb[0].mxu0
    %v1294 = vpop.f32.mrb[0].mxu0
    %v1295 = vadd.f32 %v1180, %v1294
    %v1296 = vpop.f32.mrb[0].mxu0
    %1297 = vmatprep.mubr.bf16.mxu0 0
    %1298 = vmatmul.mubr.bf16.gmra.mrb[0].mxu0 %v1212
    %v1299 = vpop.f32.mrb[0].mxu0
    %v1300 = vadd.f32 %v1180, %v1299
    %v1301 = vpop.f32.mrb[0].mxu0
    %v1302 = vpop.f32.mrb[0].mxu0
    %v1303 = vadd.f32 %v1180, %v1302
    %v1304 = vpop.f32.mrb[0].mxu0
    %1305 = vmatprep.mubr.bf16.mxu0 0
    %1306 = vmatmul.mubr.bf16.gmra.mrb[0].mxu0 %v1215
    %v1307 = vpop.f32.mrb[0].mxu0
    %v1308 = vadd.f32 %v1180, %v1307
    %v1309 = vpop.f32.mrb[0].mxu0
    %v1310 = vpop.f32.mrb[0].mxu0
    %v1311 = vadd.f32 %v1180, %v1310
    %v1312 = vpop.f32.mrb[0].mxu0
    %1313 = vdwg.mxu0
    %v1314 = vmax.f32 %v1252, 0.0
    %v1315 = vmax.f32 %v1255, 0.0
    %v1316 = vmax.f32 %v1260, 0.0
    %v1317 = vmax.f32 %v1263, 0.0
    %v1318 = vmax.f32 %v1268, 0.0
    %v1319 = vmax.f32 %v1271, 0.0
    %v1320 = vmax.f32 %v1276, 0.0
    %v1321 = vmax.f32 %v1279, 0.0
    %v1322 = vmax.f32 %v1284, 0.0
    %v1323 = vmax.f32 %v1287, 0.0
    %v1324 = vmax.f32 %v1292, 0.0
    %v1325 = vmax.f32 %v1295, 0.0
    %v1326 = vmax.f32 %v1300, 0.0
    %v1327 = vmax.f32 %v1303, 0.0
    %v1328 = vmax.f32 %v1308, 0.0
    %v1329 = vmax.f32 %v1311, 0.0
    %v1330 = vmul.f32 %v1314, %v1314
    %v1331 = vmul.f32 %v1315, %v1315
    %v1332 = vmul.f32 %v1316, %v1316
    %v1333 = vmul.f32 %v1317, %v1317
    %v1334 = vmul.f32 %v1318, %v1318
    %v1335 = vmul.f32 %v1319, %v1319
    %v1336 = vmul.f32 %v1320, %v1320
    %v1337 = vmul.f32 %v1321, %v1321
    %v1338 = vmul.f32 %v1322, %v1322
    %v1339 = vmul.f32 %v1323, %v1323
    %v1340 = vmul.f32 %v1324, %v1324
    %v1341 = vmul.f32 %v1325, %v1325
    %v1342 = vmul.f32 %v1326, %v1326
    %v1343 = vmul.f32 %v1327, %v1327
    %v1344 = vmul.f32 %v1328, %v1328
    %v1345 = vmul.f32 %v1329, %v1329
    %1362 = vrot.lane.b32.xlu0 %v1330, 32
    %v1363 = vpop.permute.xlu0 %1362
    %1364 = vrot.lane.b32.xlu0 %v1331, 32
    %v1365 = vpop.permute.xlu0 %1364
    %1366 = vrot.lane.b32.xlu0 %v1332, 32
    %v1367 = vpop.permute.xlu0 %1366
    %1368 = vrot.lane.b32.xlu0 %v1333, 32
    %v1369 = vpop.permute.xlu0 %1368
    %1370 = vrot.lane.b32.xlu0 %v1334, 32
    %v1371 = vpop.permute.xlu0 %1370
    %1372 = vrot.lane.b32.xlu0 %v1335, 32
    %v1373 = vpop.permute.xlu0 %1372
    %1374 = vrot.lane.b32.xlu0 %v1336, 32
    %v1375 = vpop.permute.xlu0 %1374
    %1376 = vrot.lane.b32.xlu0 %v1337, 32
    %v1377 = vpop.permute.xlu0 %1376
    %1378 = vrot.lane.b32.xlu0 %v1338, 32
    %v1379 = vpop.permute.xlu0 %1378
    %1380 = vrot.lane.b32.xlu0 %v1339, 32
    %v1381 = vpop.permute.xlu0 %1380
    %1382 = vrot.lane.b32.xlu0 %v1340, 32
    %v1383 = vpop.permute.xlu0 %1382
    %1384 = vrot.lane.b32.xlu0 %v1341, 32
    %v1385 = vpop.permute.xlu0 %1384
    %1386 = vrot.lane.b32.xlu0 %v1342, 32
    %v1387 = vpop.permute.xlu0 %1386
    %1388 = vrot.lane.b32.xlu0 %v1343, 32
    %v1389 = vpop.permute.xlu0 %1388
    %1390 = vrot.lane.b32.xlu0 %v1344, 32
    %v1391 = vpop.permute.xlu0 %1390
    %1392 = vrot.lane.b32.xlu0 %v1345, 32
    %v1393 = vpop.permute.xlu0 %1392
    %v1410 = vsel %vm311, %v1314, %v1363
    %v1411 = vsel %vm311, %v1315, %v1365
    %v1412 = vsel %vm311, %v1316, %v1367
    %v1413 = vsel %vm311, %v1317, %v1369
    %v1414 = vsel %vm311, %v1318, %v1371
    %v1415 = vsel %vm311, %v1319, %v1373
    %v1416 = vsel %vm311, %v1320, %v1375
    %v1417 = vsel %vm311, %v1321, %v1377
    %v1418 = vsel %vm311, %v1322, %v1379
    %v1419 = vsel %vm311, %v1323, %v1381
    %v1420 = vsel %vm311, %v1324, %v1383
    %v1421 = vsel %vm311, %v1325, %v1385
    %v1422 = vsel %vm311, %v1326, %v1387
    %v1423 = vsel %vm311, %v1327, %v1389
    %v1424 = vsel %vm311, %v1328, %v1391
    %v1425 = vsel %vm311, %v1329, %v1393
    %1426 = vmatprep.subr.mxu0 0.0
    %1427 = vmatpush1.msra.mxu0 %v1410
    %1428 = vmatprep.subr.mxu0 0.0
    %1429 = vmatpush1.msra.mxu0 %v1411
    %1430 = vmatprep.subr.mxu0 0.0
    %1431 = vmatpush1.msra.mxu0 %v1412
    %1432 = vmatprep.subr.mxu0 0.0
    %1433 = vmatpush1.msra.mxu0 %v1413
    %1434 = vmatprep.subr.mxu0 0.0
    %1435 = vmatpush1.msra.mxu0 %v1414
    %1436 = vmatprep.subr.mxu0 0.0
    %1437 = vmatpush1.msra.mxu0 %v1415
    %1438 = vmatprep.subr.mxu0 0.0
    %1439 = vmatpush1.msra.mxu0 %v1416
    %1440 = vmatprep.subr.mxu0 0.0
    %1441 = vmatpush1.msra.mxu0 %v1417
    %1442 = vmatprep.subr.mxu0 0.0
    %1443 = vmatpush1.msra.mxu0 %v1418
    %1444 = vmatprep.subr.mxu0 0.0
    %1445 = vmatpush1.msra.mxu0 %v1419
    %1446 = vmatprep.subr.mxu0 0.0
    %1447 = vmatpush1.msra.mxu0 %v1420
    %1448 = vmatprep.subr.mxu0 0.0
    %1449 = vmatpush1.msra.mxu0 %v1421
    %1450 = vmatprep.subr.mxu0 0.0
    %1451 = vmatpush1.msra.mxu0 %v1422
    %1452 = vmatprep.subr.mxu0 0.0
    %1453 = vmatpush1.msra.mxu0 %v1423
    %1454 = vmatprep.subr.mxu0 0.0
    %1455 = vmatpush1.msra.mxu0 %v1424
    %1456 = vmatprep.subr.mxu0 0.0
    %1457 = vmatpush1.msra.mxu0 %v1425
    %1458 = vmatprep.subr.mxu0 0.0
    %1459 = vmatpush1.msra.mxu0 0.0
    %1460 = vmatprep.subr.mxu0 0.0
    %1461 = vmatpush1.msra.mxu0 0.0
    %1462 = vmatprep.subr.mxu0 0.0
    %1463 = vmatpush1.msra.mxu0 0.0
    %1464 = vmatprep.subr.mxu0 0.0
    %1465 = vmatpush1.msra.mxu0 0.0
    %1466 = vmatprep.subr.mxu0 0.0
    %1467 = vmatpush1.msra.mxu0 0.0
    %1468 = vmatprep.subr.mxu0 0.0
    %1469 = vmatpush1.msra.mxu0 0.0
    %1470 = vmatprep.subr.mxu0 0.0
    %1471 = vmatpush1.msra.mxu0 0.0
    %1472 = vmatprep.subr.mxu0 0.0
    %1473 = vmatpush1.msra.mxu0 0.0
    %1474 = vmatprep.subr.mxu0 0.0
    %1475 = vmatpush1.msra.mxu0 0.0
    %1476 = vmatprep.subr.mxu0 0.0
    %1477 = vmatpush1.msra.mxu0 0.0
    %1478 = vmatprep.subr.mxu0 0.0
    %1479 = vmatpush1.msra.mxu0 0.0
    %1480 = vmatprep.subr.mxu0 0.0
    %1481 = vmatpush1.msra.mxu0 0.0
    %1482 = vmatprep.subr.mxu0 0.0
    %1483 = vmatpush1.msra.mxu0 0.0
    %1484 = vmatprep.subr.mxu0 0.0
    %1485 = vmatpush1.msra.mxu0 0.0
    %1486 = vmatprep.subr.mxu0 0.0
    %1487 = vmatpush1.msra.mxu0 0.0
    %1488 = vmatprep.subr.mxu0 0.0
    %1489 = vmatpush1.msra.mxu0 0.0
    %1490 = vmatprep.mubr.f32.mxu0 0.0
    %1491 = vmatmul.mubr.f32.gmra.mrb[0].mxu0 %v96
    %v1492 = vpop.f32.mrb[0].mxu0
    %v1493 = vadd.f32 0.0, %v1492
    %v1494 = vpop.f32.mrb[0].mxu0
    %1495 = vdwg.mxu0
    %v1496 = vmul.f32 %v1493, 0.0625
    %v1497 = vmul.f32 %v1496, %v1496
    %1499 = vrot.lane.b32.xlu0 %v1497, 32
    %v1500 = vpop.permute.xlu0 %1499
    %v1502 = vsub.f32 %v1496, %v1500
    %v1503 = vmax.f32 %v1502, 0.0
    %v1504 = vadd.f32 %v1503, 1e-05
    %v1505 = vrsqrt.pop %v1504
    %v1507 = vrot.slane %v1505, 6
    %1508 = vrot.lane.b32.xlu0 %v1507, 96
    %v1509 = vpop.permute.xlu0 %1508
    %v1511 = vmul.f32 %v1007, %v1509
    %v1513 = vrot.slane %v1511, 2
    %v1515 = vmul.f32 %v1496, %v1513
    %v1517 = vrot.slane %v1515, 5
    %v1519 = vsub.f32 %v1007, %v1517
    %v1520 = vlaneseq
    %v1521 = vshrl.u32 %v1520, 7
    %v1522 = vsub.s32 2, %v1521
    %v1523 = vrot.slane %v1511, %v1522
    %v1524 = vmul.f32 %v1314, %v1523
    %v1525 = vmul.f32 %v1315, %v1523
    %v1526 = vmul.f32 %v1316, %v1523
    %v1527 = vmul.f32 %v1317, %v1523
    %v1528 = vmul.f32 %v1318, %v1523
    %v1529 = vmul.f32 %v1319, %v1523
    %v1530 = vmul.f32 %v1320, %v1523
    %v1531 = vmul.f32 %v1321, %v1523
    %v1532 = vmul.f32 %v1322, %v1523
    %v1533 = vmul.f32 %v1323, %v1523
    %v1534 = vmul.f32 %v1324, %v1523
    %v1535 = vmul.f32 %v1325, %v1523
    %v1536 = vmul.f32 %v1326, %v1523
    %v1537 = vmul.f32 %v1327, %v1523
    %v1538 = vmul.f32 %v1328, %v1523
    %v1539 = vmul.f32 %v1329, %v1523
    %v1540 = vlaneseq
    %v1541 = vshrl.u32 %v1540, 7
    %v1542 = vsub.s32 3, %v1541
    %v1543 = vrot.slane %v1519, %v1542
    %v1544 = vadd.f32 %v1524, %v1543
    %v1545 = vadd.f32 %v1525, %v1543
    %v1546 = vadd.f32 %v1526, %v1543
    %v1547 = vadd.f32 %v1527, %v1543
    %v1548 = vadd.f32 %v1528, %v1543
    %v1549 = vadd.f32 %v1529, %v1543
    %v1550 = vadd.f32 %v1530, %v1543
    %v1551 = vadd.f32 %v1531, %v1543
    %v1552 = vadd.f32 %v1532, %v1543
    %v1553 = vadd.f32 %v1533, %v1543
    %v1554 = vadd.f32 %v1534, %v1543
    %v1555 = vadd.f32 %v1535, %v1543
    %v1556 = vadd.f32 %v1536, %v1543
    %v1557 = vadd.f32 %v1537, %v1543
    %v1558 = vadd.f32 %v1538, %v1543
    %v1559 = vadd.f32 %v1539, %v1543
    %v1560 = vmax.f32 %v1544, 0.0
    %v1561 = vmax.f32 %v1545, 0.0
    %v1562 = vmax.f32 %v1546, 0.0
    %v1563 = vmax.f32 %v1547, 0.0
    %v1564 = vmax.f32 %v1548, 0.0
    %v1565 = vmax.f32 %v1549, 0.0
    %v1566 = vmax.f32 %v1550, 0.0
    %v1567 = vmax.f32 %v1551, 0.0
    %v1568 = vmax.f32 %v1552, 0.0
    %v1569 = vmax.f32 %v1553, 0.0
    %v1570 = vmax.f32 %v1554, 0.0
    %v1571 = vmax.f32 %v1555, 0.0
    %v1572 = vmax.f32 %v1556, 0.0
    %v1573 = vmax.f32 %v1557, 0.0
    %v1574 = vmax.f32 %v1558, 0.0
    %v1575 = vmax.f32 %v1559, 0.0
    %v1576 = vpack.c.bf16 %v1561, %v1560
    %v1577 = vpack.c.bf16 %v1563, %v1562
    %v1578 = vpack.c.bf16 %v1565, %v1564
    %v1579 = vpack.c.bf16 %v1567, %v1566
    %v1580 = vpack.c.bf16 %v1569, %v1568
    %v1581 = vpack.c.bf16 %v1571, %v1570
    %v1582 = vpack.c.bf16 %v1573, %v1572
    %v1583 = vpack.c.bf16 %v1575, %v1574
    %s1584 = sld [smem:[#allocation2 + $0x2]]
    %1585 = vmatprep.subr.bf16.mxu0 0
    %1586 = vmatpush1.bf16.msra.mxu0 %v1576
    %1587 = vmatprep.subr.bf16.mxu0 0
    %1588 = vmatpush1.bf16.msra.mxu0 %v1577
    %1589 = vmatprep.subr.bf16.mxu0 0
    %1590 = vmatpush1.bf16.msra.mxu0 %v1578
    %1591 = vmatprep.subr.bf16.mxu0 0
    %1592 = vmatpush1.bf16.msra.mxu0 %v1579
    %1593 = vmatprep.subr.bf16.mxu0 0
    %1594 = vmatpush1.bf16.msra.mxu0 %v1580
    %1595 = vmatprep.subr.bf16.mxu0 0
    %1596 = vmatpush1.bf16.msra.mxu0 %v1581
    %1597 = vmatprep.subr.bf16.mxu0 0
    %1598 = vmatpush1.bf16.msra.mxu0 %v1582
    %1599 = vmatprep.subr.bf16.mxu0 0
    %1600 = vmatpush1.bf16.msra.mxu0 %v1583
    %1601 = vmatprep.subr.bf16.mxu0 0
    %1602 = vmatpush1.bf16.msra.mxu0 0
    %1603 = vmatprep.subr.bf16.mxu0 0
    %1604 = vmatpush1.bf16.msra.mxu0 0
    %1605 = vmatprep.subr.bf16.mxu0 0
    %1606 = vmatpush1.bf16.msra.mxu0 0
    %1607 = vmatprep.subr.bf16.mxu0 0
    %1608 = vmatpush1.bf16.msra.mxu0 0
    %1609 = vmatprep.subr.bf16.mxu0 0
    %1610 = vmatpush1.bf16.msra.mxu0 0
    %1611 = vmatprep.subr.bf16.mxu0 0
    %1612 = vmatpush1.bf16.msra.mxu0 0
    %1613 = vmatprep.subr.bf16.mxu0 0
    %1614 = vmatpush1.bf16.msra.mxu0 0
    %1615 = vmatprep.subr.bf16.mxu0 0
    %1616 = vmatpush1.bf16.msra.mxu0 0
    %1617 = vmatprep.mubr.bf16.mxu0 0
    %1618 = vmatmul.mubr.bf16.gmra.mrb[0].mxu0 %v130
    %v1619 = vpop.f32.mrb[0].mxu0
    %v1620 = vadd.f32 0.0, %v1619
    %v1621 = vpop.f32.mrb[0].mxu0
    %v1622 = vpop.f32.mrb[0].mxu0
    %v1623 = vadd.f32 0.0, %v1622
    %v1624 = vpop.f32.mrb[0].mxu0
    %1625 = vmatprep.mubr.bf16.mxu0 0
    %1626 = vmatmul.mubr.bf16.gmra.mrb[0].mxu0 %v131
    %v1627 = vpop.f32.mrb[0].mxu0
    %v1628 = vadd.f32 0.0, %v1627
    %v1629 = vpop.f32.mrb[0].mxu0
    %v1630 = vpop.f32.mrb[0].mxu0
    %v1631 = vadd.f32 0.0, %v1630
    %v1632 = vpop.f32.mrb[0].mxu0
    %1633 = vmatprep.mubr.bf16.mxu0 0
    %1634 = vmatmul.mubr.bf16.gmra.mrb[0].mxu0 %v132
    %v1635 = vpop.f32.mrb[0].mxu0
    %v1636 = vadd.f32 0.0, %v1635
    %v1637 = vpop.f32.mrb[0].mxu0
    %v1638 = vpop.f32.mrb[0].mxu0
    %v1639 = vadd.f32 0.0, %v1638
    %v1640 = vpop.f32.mrb[0].mxu0
    %1641 = vmatprep.mubr.bf16.mxu0 0
    %1642 = vmatmul.mubr.bf16.gmra.mrb[0].mxu0 %v133
    %v1643 = vpop.f32.mrb[0].mxu0
    %v1644 = vadd.f32 0.0, %v1643
    %v1645 = vpop.f32.mrb[0].mxu0
    %v1646 = vpop.f32.mrb[0].mxu0
    %v1647 = vadd.f32 0.0, %v1646
    %v1648 = vpop.f32.mrb[0].mxu0
    %1649 = vmatprep.mubr.bf16.mxu0 0
    %1650 = vmatmul.mubr.bf16.gmra.mrb[0].mxu0 %v134
    %v1651 = vpop.f32.mrb[0].mxu0
    %v1652 = vadd.f32 0.0, %v1651
    %v1653 = vpop.f32.mrb[0].mxu0
    %v1654 = vpop.f32.mrb[0].mxu0
    %v1655 = vadd.f32 0.0, %v1654
    %v1656 = vpop.f32.mrb[0].mxu0
    %1657 = vmatprep.mubr.bf16.mxu0 0
    %1658 = vmatmul.mubr.bf16.gmra.mrb[0].mxu0 %v135
    %v1659 = vpop.f32.mrb[0].mxu0
    %v1660 = vadd.f32 0.0, %v1659
    %v1661 = vpop.f32.mrb[0].mxu0
    %v1662 = vpop.f32.mrb[0].mxu0
    %v1663 = vadd.f32 0.0, %v1662
    %v1664 = vpop.f32.mrb[0].mxu0
    %1665 = vmatprep.mubr.bf16.mxu0 0
    %1666 = vmatmul.mubr.bf16.gmra.mrb[0].mxu0 %v136
    %v1667 = vpop.f32.mrb[0].mxu0
    %v1668 = vadd.f32 0.0, %v1667
    %v1669 = vpop.f32.mrb[0].mxu0
    %v1670 = vpop.f32.mrb[0].mxu0
    %v1671 = vadd.f32 0.0, %v1670
    %v1672 = vpop.f32.mrb[0].mxu0
    %1673 = vmatprep.mubr.bf16.mxu0 0
    %1674 = vmatmul.mubr.bf16.gmra.mrb[0].mxu0 %v137
    %v1675 = vpop.f32.mrb[0].mxu0
    %v1676 = vadd.f32 0.0, %v1675
    %v1677 = vpop.f32.mrb[0].mxu0
    %v1678 = vpop.f32.mrb[0].mxu0
    %v1679 = vadd.f32 0.0, %v1678
    %v1680 = vpop.f32.mrb[0].mxu0
    %1681 = vdwg.mxu0
    %s1682 = sadd.f32 %s1584, 1.0
    %v1683 = vstv %s1682
    %v1684 = vmul.f32 %v1683, %v1560
    %v1685 = vmul.f32 %v1683, %v1561
    %v1686 = vmul.f32 %v1683, %v1562
    %v1687 = vmul.f32 %v1683, %v1563
    %v1688 = vmul.f32 %v1683, %v1564
    %v1689 = vmul.f32 %v1683, %v1565
    %v1690 = vmul.f32 %v1683, %v1566
    %v1691 = vmul.f32 %v1683, %v1567
    %v1692 = vmul.f32 %v1683, %v1568
    %v1693 = vmul.f32 %v1683, %v1569
    %v1694 = vmul.f32 %v1683, %v1570
    %v1695 = vmul.f32 %v1683, %v1571
    %v1696 = vmul.f32 %v1683, %v1572
    %v1697 = vmul.f32 %v1683, %v1573
    %v1698 = vmul.f32 %v1683, %v1574
    %v1699 = vmul.f32 %v1683, %v1575
    %v1700 = vadd.f32 %v1684, %v1620
    %v1701 = vadd.f32 %v1685, %v1623
    %v1702 = vadd.f32 %v1686, %v1628
    %v1703 = vadd.f32 %v1687, %v1631
    %v1704 = vadd.f32 %v1688, %v1636
    %v1705 = vadd.f32 %v1689, %v1639
    %v1706 = vadd.f32 %v1690, %v1644
    %v1707 = vadd.f32 %v1691, %v1647
    %v1708 = vadd.f32 %v1692, %v1652
    %v1709 = vadd.f32 %v1693, %v1655
    %v1710 = vadd.f32 %v1694, %v1660
    %v1711 = vadd.f32 %v1695, %v1663
    %v1712 = vadd.f32 %v1696, %v1668
    %v1713 = vadd.f32 %v1697, %v1671
    %v1714 = vadd.f32 %v1698, %v1676
    %v1715 = vadd.f32 %v1699, %v1679
    %s1716 = scalar_lea.vmem %s3, 64
    %v1717 = vld [vmem:[%s1716] sm:$0xf]
    %v1718 = vld [vmem:[%s1716 + $0x4] sm:$0xf]
    %v1719 = vld [vmem:[%s1716 + $0x8] sm:$0xf]
    %v1720 = vld [vmem:[%s1716 + $0xc] sm:$0xf]
    %s1721 = scalar_lea.vmem %s3, 80
    %v1722 = vld [vmem:[%s1721] sm:$0xf]
    %v1723 = vld [vmem:[%s1721 + $0x4] sm:$0xf]
    %v1724 = vld [vmem:[%s1721 + $0x8] sm:$0xf]
    %v1725 = vld [vmem:[%s1721 + $0xc] sm:$0xf]
    %s1726 = scalar_lea.vmem [#allocation6], 16
    %v1727 = vld [vmem:[%s1726] sm:$0xff]
    %v1728 = vpack.c.bf16 %v1701, %v1700
    %v1729 = vpack.c.bf16 %v1703, %v1702
    %v1730 = vpack.c.bf16 %v1705, %v1704
    %v1731 = vpack.c.bf16 %v1707, %v1706
    %v1732 = vpack.c.bf16 %v1709, %v1708
    %v1733 = vpack.c.bf16 %v1711, %v1710
    %v1734 = vpack.c.bf16 %v1713, %v1712
    %v1735 = vpack.c.bf16 %v1715, %v1714
    %v1736 = vlaneseq
    %v1737 = vshrl.u32 %v1736, 7
    %v1738 = vsub.s32 0, %v1737
    %v1739 = vrot.slane %v1727, %v1738
    %v1744 = vunpack.c.l.b16 %v1717
    %v1745 = vunpack.c.l.b16 %v1718
    %v1746 = vunpack.c.l.b16 %v1719
    %v1747 = vunpack.c.l.b16 %v1720
    %v1748 = vpack.c.b16 %v1745, %v1744
    %v1749 = vpack.c.b16 %v1747, %v1746
    %v1753 = vsel %vm311, %v1728, 0
    %v1756 = vsel %vm311, %v1729, 0
    %v1759 = vsel %vm311, %v1730, 0
    %v1762 = vsel %vm311, %v1731, 0
    %v1765 = vsel %vm311, %v1732, 0
    %v1768 = vsel %vm311, %v1733, 0
    %v1771 = vsel %vm311, %v1734, 0
    %v1774 = vsel %vm311, %v1735, 0
    %1776 = vmatprep.subr.bf16.mxu0 0
    %1777 = vmatpush1.bf16.msra.mxu0 %v1748
    %1778 = vmatprep.subr.bf16.mxu0 0
    %1779 = vmatpush1.bf16.msra.mxu0 %v1749
    %1780 = vmatprep.subr.bf16.mxu0 0
    %1781 = vmatpush1.bf16.msra.mxu0 0
    %1782 = vmatprep.subr.bf16.mxu0 0
    %1783 = vmatpush1.bf16.msra.mxu0 0
    %1784 = vmatprep.subr.bf16.mxu0 0
    %1785 = vmatpush1.bf16.msra.mxu0 0
    %1786 = vmatprep.subr.bf16.mxu0 0
    %1787 = vmatpush1.bf16.msra.mxu0 0
    %1788 = vmatprep.subr.bf16.mxu0 0
    %1789 = vmatpush1.bf16.msra.mxu0 0
    %1790 = vmatprep.subr.bf16.mxu0 0
    %1791 = vmatpush1.bf16.msra.mxu0 0
    %1792 = vmatprep.subr.bf16.mxu0 0
    %1793 = vmatpush1.bf16.msra.mxu0 0
    %1794 = vmatprep.subr.bf16.mxu0 0
    %1795 = vmatpush1.bf16.msra.mxu0 0
    %1796 = vmatprep.subr.bf16.mxu0 0
    %1797 = vmatpush1.bf16.msra.mxu0 0
    %1798 = vmatprep.subr.bf16.mxu0 0
    %1799 = vmatpush1.bf16.msra.mxu0 0
    %1800 = vmatprep.subr.bf16.mxu0 0
    %1801 = vmatpush1.bf16.msra.mxu0 0
    %1802 = vmatprep.subr.bf16.mxu0 0
    %1803 = vmatpush1.bf16.msra.mxu0 0
    %1804 = vmatprep.subr.bf16.mxu0 0
    %1805 = vmatpush1.bf16.msra.mxu0 0
    %1806 = vmatprep.subr.bf16.mxu0 0
    %1807 = vmatpush1.bf16.msra.mxu0 0
    %1808 = vmatprep.mubr.bf16.mxu0 0
    %1809 = vmatmul.mubr.bf16.gmra.mrb[0].mxu0 %v1753
    %v1810 = vpop.f32.mrb[0].mxu0
    %v1811 = vadd.f32 %v1739, %v1810
    %v1812 = vpop.f32.mrb[0].mxu0
    %v1813 = vpop.f32.mrb[0].mxu0
    %v1814 = vadd.f32 %v1739, %v1813
    %v1815 = vpop.f32.mrb[0].mxu0
    %1816 = vmatprep.mubr.bf16.mxu0 0
    %1817 = vmatmul.mubr.bf16.gmra.mrb[0].mxu0 %v1756
    %v1818 = vpop.f32.mrb[0].mxu0
    %v1819 = vadd.f32 %v1739, %v1818
    %v1820 = vpop.f32.mrb[0].mxu0
    %v1821 = vpop.f32.mrb[0].mxu0
    %v1822 = vadd.f32 %v1739, %v1821
    %v1823 = vpop.f32.mrb[0].mxu0
    %1824 = vmatprep.mubr.bf16.mxu0 0
    %1825 = vmatmul.mubr.bf16.gmra.mrb[0].mxu0 %v1759
    %v1826 = vpop.f32.mrb[0].mxu0
    %v1827 = vadd.f32 %v1739, %v1826
    %v1828 = vpop.f32.mrb[0].mxu0
    %v1829 = vpop.f32.mrb[0].mxu0
    %v1830 = vadd.f32 %v1739, %v1829
    %v1831 = vpop.f32.mrb[0].mxu0
    %1832 = vmatprep.mubr.bf16.mxu0 0
    %1833 = vmatmul.mubr.bf16.gmra.mrb[0].mxu0 %v1762
    %v1834 = vpop.f32.mrb[0].mxu0
    %v1835 = vadd.f32 %v1739, %v1834
    %v1836 = vpop.f32.mrb[0].mxu0
    %v1837 = vpop.f32.mrb[0].mxu0
    %v1838 = vadd.f32 %v1739, %v1837
    %v1839 = vpop.f32.mrb[0].mxu0
    %1840 = vmatprep.mubr.bf16.mxu0 0
    %1841 = vmatmul.mubr.bf16.gmra.mrb[0].mxu0 %v1765
    %v1842 = vpop.f32.mrb[0].mxu0
    %v1843 = vadd.f32 %v1739, %v1842
    %v1844 = vpop.f32.mrb[0].mxu0
    %v1845 = vpop.f32.mrb[0].mxu0
    %v1846 = vadd.f32 %v1739, %v1845
    %v1847 = vpop.f32.mrb[0].mxu0
    %1848 = vmatprep.mubr.bf16.mxu0 0
    %1849 = vmatmul.mubr.bf16.gmra.mrb[0].mxu0 %v1768
    %v1850 = vpop.f32.mrb[0].mxu0
    %v1851 = vadd.f32 %v1739, %v1850
    %v1852 = vpop.f32.mrb[0].mxu0
    %v1853 = vpop.f32.mrb[0].mxu0
    %v1854 = vadd.f32 %v1739, %v1853
    %v1855 = vpop.f32.mrb[0].mxu0
    %1856 = vmatprep.mubr.bf16.mxu0 0
    %1857 = vmatmul.mubr.bf16.gmra.mrb[0].mxu0 %v1771
    %v1858 = vpop.f32.mrb[0].mxu0
    %v1859 = vadd.f32 %v1739, %v1858
    %v1860 = vpop.f32.mrb[0].mxu0
    %v1861 = vpop.f32.mrb[0].mxu0
    %v1862 = vadd.f32 %v1739, %v1861
    %v1863 = vpop.f32.mrb[0].mxu0
    %1864 = vmatprep.mubr.bf16.mxu0 0
    %1865 = vmatmul.mubr.bf16.gmra.mrb[0].mxu0 %v1774
    %v1866 = vpop.f32.mrb[0].mxu0
    %v1867 = vadd.f32 %v1739, %v1866
    %v1868 = vpop.f32.mrb[0].mxu0
    %v1869 = vpop.f32.mrb[0].mxu0
    %v1870 = vadd.f32 %v1739, %v1869
    %v1871 = vpop.f32.mrb[0].mxu0
    %1872 = vdwg.mxu0
    %v1873 = vmax.f32 %v1811, 0.0
    %v1874 = vmax.f32 %v1814, 0.0
    %v1875 = vmax.f32 %v1819, 0.0
    %v1876 = vmax.f32 %v1822, 0.0
    %v1877 = vmax.f32 %v1827, 0.0
    %v1878 = vmax.f32 %v1830, 0.0
    %v1879 = vmax.f32 %v1835, 0.0
    %v1880 = vmax.f32 %v1838, 0.0
    %v1881 = vmax.f32 %v1843, 0.0
    %v1882 = vmax.f32 %v1846, 0.0
    %v1883 = vmax.f32 %v1851, 0.0
    %v1884 = vmax.f32 %v1854, 0.0
    %v1885 = vmax.f32 %v1859, 0.0
    %v1886 = vmax.f32 %v1862, 0.0
    %v1887 = vmax.f32 %v1867, 0.0
    %v1888 = vmax.f32 %v1870, 0.0
    %v1889 = vpack.c.bf16 %v1874, %v1873
    %v1890 = vpack.c.bf16 %v1876, %v1875
    %v1891 = vpack.c.bf16 %v1878, %v1877
    %v1892 = vpack.c.bf16 %v1880, %v1879
    %v1893 = vpack.c.bf16 %v1882, %v1881
    %v1894 = vpack.c.bf16 %v1884, %v1883
    %v1895 = vpack.c.bf16 %v1886, %v1885
    %v1896 = vpack.c.bf16 %v1888, %v1887
    %v1897 = vlaneseq
    %v1898 = vshrl.u32 %v1897, 7
    %v1899 = vsub.s32 1, %v1898
    %v1900 = vrot.slane %v1727, %v1899
    %v1905 = vunpack.c.l.b16 %v1722
    %v1906 = vunpack.c.l.b16 %v1723
    %v1907 = vunpack.c.l.b16 %v1724
    %v1908 = vunpack.c.l.b16 %v1725
    %v1909 = vpack.c.b16 %v1906, %v1905
    %v1910 = vpack.c.b16 %v1908, %v1907
    %v1914 = vsel %vm311, %v1889, 0
    %v1917 = vsel %vm311, %v1890, 0
    %v1920 = vsel %vm311, %v1891, 0
    %v1923 = vsel %vm311, %v1892, 0
    %v1926 = vsel %vm311, %v1893, 0
    %v1929 = vsel %vm311, %v1894, 0
    %v1932 = vsel %vm311, %v1895, 0
    %v1935 = vsel %vm311, %v1896, 0
    %1937 = vmatprep.subr.bf16.mxu0 0
    %1938 = vmatpush1.bf16.msra.mxu0 %v1909
    %1939 = vmatprep.subr.bf16.mxu0 0
    %1940 = vmatpush1.bf16.msra.mxu0 %v1910
    %1941 = vmatprep.subr.bf16.mxu0 0
    %1942 = vmatpush1.bf16.msra.mxu0 0
    %1943 = vmatprep.subr.bf16.mxu0 0
    %1944 = vmatpush1.bf16.msra.mxu0 0
    %1945 = vmatprep.subr.bf16.mxu0 0
    %1946 = vmatpush1.bf16.msra.mxu0 0
    %1947 = vmatprep.subr.bf16.mxu0 0
    %1948 = vmatpush1.bf16.msra.mxu0 0
    %1949 = vmatprep.subr.bf16.mxu0 0
    %1950 = vmatpush1.bf16.msra.mxu0 0
    %1951 = vmatprep.subr.bf16.mxu0 0
    %1952 = vmatpush1.bf16.msra.mxu0 0
    %1953 = vmatprep.subr.bf16.mxu0 0
    %1954 = vmatpush1.bf16.msra.mxu0 0
    %1955 = vmatprep.subr.bf16.mxu0 0
    %1956 = vmatpush1.bf16.msra.mxu0 0
    %1957 = vmatprep.subr.bf16.mxu0 0
    %1958 = vmatpush1.bf16.msra.mxu0 0
    %1959 = vmatprep.subr.bf16.mxu0 0
    %1960 = vmatpush1.bf16.msra.mxu0 0
    %1961 = vmatprep.subr.bf16.mxu0 0
    %1962 = vmatpush1.bf16.msra.mxu0 0
    %1963 = vmatprep.subr.bf16.mxu0 0
    %1964 = vmatpush1.bf16.msra.mxu0 0
    %1965 = vmatprep.subr.bf16.mxu0 0
    %1966 = vmatpush1.bf16.msra.mxu0 0
    %1967 = vmatprep.subr.bf16.mxu0 0
    %1968 = vmatpush1.bf16.msra.mxu0 0
    %1969 = vmatprep.mubr.bf16.mxu0 0
    %1970 = vmatmul.mubr.bf16.gmra.mrb[0].mxu0 %v1914
    %v1971 = vpop.f32.mrb[0].mxu0
    %v1972 = vadd.f32 %v1900, %v1971
    %v1973 = vpop.f32.mrb[0].mxu0
    %v1974 = vpop.f32.mrb[0].mxu0
    %v1975 = vadd.f32 %v1900, %v1974
    %v1976 = vpop.f32.mrb[0].mxu0
    %1977 = vmatprep.mubr.bf16.mxu0 0
    %1978 = vmatmul.mubr.bf16.gmra.mrb[0].mxu0 %v1917
    %v1979 = vpop.f32.mrb[0].mxu0
    %v1980 = vadd.f32 %v1900, %v1979
    %v1981 = vpop.f32.mrb[0].mxu0
    %v1982 = vpop.f32.mrb[0].mxu0
    %v1983 = vadd.f32 %v1900, %v1982
    %v1984 = vpop.f32.mrb[0].mxu0
    %1985 = vmatprep.mubr.bf16.mxu0 0
    %1986 = vmatmul.mubr.bf16.gmra.mrb[0].mxu0 %v1920
    %v1987 = vpop.f32.mrb[0].mxu0
    %v1988 = vadd.f32 %v1900, %v1987
    %v1989 = vpop.f32.mrb[0].mxu0
    %v1990 = vpop.f32.mrb[0].mxu0
    %v1991 = vadd.f32 %v1900, %v1990
    %v1992 = vpop.f32.mrb[0].mxu0
    %1993 = vmatprep.mubr.bf16.mxu0 0
    %1994 = vmatmul.mubr.bf16.gmra.mrb[0].mxu0 %v1923
    %v1995 = vpop.f32.mrb[0].mxu0
    %v1996 = vadd.f32 %v1900, %v1995
    %v1997 = vpop.f32.mrb[0].mxu0
    %v1998 = vpop.f32.mrb[0].mxu0
    %v1999 = vadd.f32 %v1900, %v1998
    %v2000 = vpop.f32.mrb[0].mxu0
    %2001 = vmatprep.mubr.bf16.mxu0 0
    %2002 = vmatmul.mubr.bf16.gmra.mrb[0].mxu0 %v1926
    %v2003 = vpop.f32.mrb[0].mxu0
    %v2004 = vadd.f32 %v1900, %v2003
    %v2005 = vpop.f32.mrb[0].mxu0
    %v2006 = vpop.f32.mrb[0].mxu0
    %v2007 = vadd.f32 %v1900, %v2006
    %v2008 = vpop.f32.mrb[0].mxu0
    %2009 = vmatprep.mubr.bf16.mxu0 0
    %2010 = vmatmul.mubr.bf16.gmra.mrb[0].mxu0 %v1929
    %v2011 = vpop.f32.mrb[0].mxu0
    %v2012 = vadd.f32 %v1900, %v2011
    %v2013 = vpop.f32.mrb[0].mxu0
    %v2014 = vpop.f32.mrb[0].mxu0
    %v2015 = vadd.f32 %v1900, %v2014
    %v2016 = vpop.f32.mrb[0].mxu0
    %2017 = vmatprep.mubr.bf16.mxu0 0
    %2018 = vmatmul.mubr.bf16.gmra.mrb[0].mxu0 %v1932
    %v2019 = vpop.f32.mrb[0].mxu0
    %v2020 = vadd.f32 %v1900, %v2019
    %v2021 = vpop.f32.mrb[0].mxu0
    %v2022 = vpop.f32.mrb[0].mxu0
    %v2023 = vadd.f32 %v1900, %v2022
    %v2024 = vpop.f32.mrb[0].mxu0
    %2025 = vmatprep.mubr.bf16.mxu0 0
    %2026 = vmatmul.mubr.bf16.gmra.mrb[0].mxu0 %v1935
    %v2027 = vpop.f32.mrb[0].mxu0
    %v2028 = vadd.f32 %v1900, %v2027
    %v2029 = vpop.f32.mrb[0].mxu0
    %v2030 = vpop.f32.mrb[0].mxu0
    %v2031 = vadd.f32 %v1900, %v2030
    %v2032 = vpop.f32.mrb[0].mxu0
    %2033 = vdwg.mxu0
    %v2034 = vmax.f32 %v1972, 0.0
    %v2035 = vmax.f32 %v1975, 0.0
    %v2036 = vmax.f32 %v1980, 0.0
    %v2037 = vmax.f32 %v1983, 0.0
    %v2038 = vmax.f32 %v1988, 0.0
    %v2039 = vmax.f32 %v1991, 0.0
    %v2040 = vmax.f32 %v1996, 0.0
    %v2041 = vmax.f32 %v1999, 0.0
    %v2042 = vmax.f32 %v2004, 0.0
    %v2043 = vmax.f32 %v2007, 0.0
    %v2044 = vmax.f32 %v2012, 0.0
    %v2045 = vmax.f32 %v2015, 0.0
    %v2046 = vmax.f32 %v2020, 0.0
    %v2047 = vmax.f32 %v2023, 0.0
    %v2048 = vmax.f32 %v2028, 0.0
    %v2049 = vmax.f32 %v2031, 0.0
    %v2050 = vmul.f32 %v2034, %v2034
    %v2051 = vmul.f32 %v2035, %v2035
    %v2052 = vmul.f32 %v2036, %v2036
    %v2053 = vmul.f32 %v2037, %v2037
    %v2054 = vmul.f32 %v2038, %v2038
    %v2055 = vmul.f32 %v2039, %v2039
    %v2056 = vmul.f32 %v2040, %v2040
    %v2057 = vmul.f32 %v2041, %v2041
    %v2058 = vmul.f32 %v2042, %v2042
    %v2059 = vmul.f32 %v2043, %v2043
    %v2060 = vmul.f32 %v2044, %v2044
    %v2061 = vmul.f32 %v2045, %v2045
    %v2062 = vmul.f32 %v2046, %v2046
    %v2063 = vmul.f32 %v2047, %v2047
    %v2064 = vmul.f32 %v2048, %v2048
    %v2065 = vmul.f32 %v2049, %v2049
    %2082 = vrot.lane.b32.xlu0 %v2050, 32
    %v2083 = vpop.permute.xlu0 %2082
    %2084 = vrot.lane.b32.xlu0 %v2051, 32
    %v2085 = vpop.permute.xlu0 %2084
    %2086 = vrot.lane.b32.xlu0 %v2052, 32
    %v2087 = vpop.permute.xlu0 %2086
    %2088 = vrot.lane.b32.xlu0 %v2053, 32
    %v2089 = vpop.permute.xlu0 %2088
    %2090 = vrot.lane.b32.xlu0 %v2054, 32
    %v2091 = vpop.permute.xlu0 %2090
    %2092 = vrot.lane.b32.xlu0 %v2055, 32
    %v2093 = vpop.permute.xlu0 %2092
    %2094 = vrot.lane.b32.xlu0 %v2056, 32
    %v2095 = vpop.permute.xlu0 %2094
    %2096 = vrot.lane.b32.xlu0 %v2057, 32
    %v2097 = vpop.permute.xlu0 %2096
    %2098 = vrot.lane.b32.xlu0 %v2058, 32
    %v2099 = vpop.permute.xlu0 %2098
    %2100 = vrot.lane.b32.xlu0 %v2059, 32
    %v2101 = vpop.permute.xlu0 %2100
    %2102 = vrot.lane.b32.xlu0 %v2060, 32
    %v2103 = vpop.permute.xlu0 %2102
    %2104 = vrot.lane.b32.xlu0 %v2061, 32
    %v2105 = vpop.permute.xlu0 %2104
    %2106 = vrot.lane.b32.xlu0 %v2062, 32
    %v2107 = vpop.permute.xlu0 %2106
    %2108 = vrot.lane.b32.xlu0 %v2063, 32
    %v2109 = vpop.permute.xlu0 %2108
    %2110 = vrot.lane.b32.xlu0 %v2064, 32
    %v2111 = vpop.permute.xlu0 %2110
    %2112 = vrot.lane.b32.xlu0 %v2065, 32
    %v2113 = vpop.permute.xlu0 %2112
    %v2130 = vsel %vm311, %v2034, %v2083
    %v2131 = vsel %vm311, %v2035, %v2085
    %v2132 = vsel %vm311, %v2036, %v2087
    %v2133 = vsel %vm311, %v2037, %v2089
    %v2134 = vsel %vm311, %v2038, %v2091
    %v2135 = vsel %vm311, %v2039, %v2093
    %v2136 = vsel %vm311, %v2040, %v2095
    %v2137 = vsel %vm311, %v2041, %v2097
    %v2138 = vsel %vm311, %v2042, %v2099
    %v2139 = vsel %vm311, %v2043, %v2101
    %v2140 = vsel %vm311, %v2044, %v2103
    %v2141 = vsel %vm311, %v2045, %v2105
    %v2142 = vsel %vm311, %v2046, %v2107
    %v2143 = vsel %vm311, %v2047, %v2109
    %v2144 = vsel %vm311, %v2048, %v2111
    %v2145 = vsel %vm311, %v2049, %v2113
    %2146 = vmatprep.subr.mxu0 0.0
    %2147 = vmatpush1.msra.mxu0 %v2130
    %2148 = vmatprep.subr.mxu0 0.0
    %2149 = vmatpush1.msra.mxu0 %v2131
    %2150 = vmatprep.subr.mxu0 0.0
    %2151 = vmatpush1.msra.mxu0 %v2132
    %2152 = vmatprep.subr.mxu0 0.0
    %2153 = vmatpush1.msra.mxu0 %v2133
    %2154 = vmatprep.subr.mxu0 0.0
    %2155 = vmatpush1.msra.mxu0 %v2134
    %2156 = vmatprep.subr.mxu0 0.0
    %2157 = vmatpush1.msra.mxu0 %v2135
    %2158 = vmatprep.subr.mxu0 0.0
    %2159 = vmatpush1.msra.mxu0 %v2136
    %2160 = vmatprep.subr.mxu0 0.0
    %2161 = vmatpush1.msra.mxu0 %v2137
    %2162 = vmatprep.subr.mxu0 0.0
    %2163 = vmatpush1.msra.mxu0 %v2138
    %2164 = vmatprep.subr.mxu0 0.0
    %2165 = vmatpush1.msra.mxu0 %v2139
    %2166 = vmatprep.subr.mxu0 0.0
    %2167 = vmatpush1.msra.mxu0 %v2140
    %2168 = vmatprep.subr.mxu0 0.0
    %2169 = vmatpush1.msra.mxu0 %v2141
    %2170 = vmatprep.subr.mxu0 0.0
    %2171 = vmatpush1.msra.mxu0 %v2142
    %2172 = vmatprep.subr.mxu0 0.0
    %2173 = vmatpush1.msra.mxu0 %v2143
    %2174 = vmatprep.subr.mxu0 0.0
    %2175 = vmatpush1.msra.mxu0 %v2144
    %2176 = vmatprep.subr.mxu0 0.0
    %2177 = vmatpush1.msra.mxu0 %v2145
    %2178 = vmatprep.subr.mxu0 0.0
    %2179 = vmatpush1.msra.mxu0 0.0
    %2180 = vmatprep.subr.mxu0 0.0
    %2181 = vmatpush1.msra.mxu0 0.0
    %2182 = vmatprep.subr.mxu0 0.0
    %2183 = vmatpush1.msra.mxu0 0.0
    %2184 = vmatprep.subr.mxu0 0.0
    %2185 = vmatpush1.msra.mxu0 0.0
    %2186 = vmatprep.subr.mxu0 0.0
    %2187 = vmatpush1.msra.mxu0 0.0
    %2188 = vmatprep.subr.mxu0 0.0
    %2189 = vmatpush1.msra.mxu0 0.0
    %2190 = vmatprep.subr.mxu0 0.0
    %2191 = vmatpush1.msra.mxu0 0.0
    %2192 = vmatprep.subr.mxu0 0.0
    %2193 = vmatpush1.msra.mxu0 0.0
    %2194 = vmatprep.subr.mxu0 0.0
    %2195 = vmatpush1.msra.mxu0 0.0
    %2196 = vmatprep.subr.mxu0 0.0
    %2197 = vmatpush1.msra.mxu0 0.0
    %2198 = vmatprep.subr.mxu0 0.0
    %2199 = vmatpush1.msra.mxu0 0.0
    %2200 = vmatprep.subr.mxu0 0.0
    %2201 = vmatpush1.msra.mxu0 0.0
    %2202 = vmatprep.subr.mxu0 0.0
    %2203 = vmatpush1.msra.mxu0 0.0
    %2204 = vmatprep.subr.mxu0 0.0
    %2205 = vmatpush1.msra.mxu0 0.0
    %2206 = vmatprep.subr.mxu0 0.0
    %2207 = vmatpush1.msra.mxu0 0.0
    %2208 = vmatprep.subr.mxu0 0.0
    %2209 = vmatpush1.msra.mxu0 0.0
    %2210 = vmatprep.mubr.f32.mxu0 0.0
    %2211 = vmatmul.mubr.f32.gmra.mrb[0].mxu0 %v96
    %v2212 = vpop.f32.mrb[0].mxu0
    %v2213 = vadd.f32 0.0, %v2212
    %v2214 = vpop.f32.mrb[0].mxu0
    %2215 = vdwg.mxu0
    %v2216 = vmul.f32 %v2213, 0.0625
    %v2217 = vmul.f32 %v2216, %v2216
    %2219 = vrot.lane.b32.xlu0 %v2217, 32
    %v2220 = vpop.permute.xlu0 %2219
    %v2222 = vsub.f32 %v2216, %v2220
    %v2223 = vmax.f32 %v2222, 0.0
    %v2224 = vadd.f32 %v2223, 1e-05
    %v2225 = vrsqrt.pop %v2224
    %v2227 = vrot.slane %v2225, 6
    %2228 = vrot.lane.b32.xlu0 %v2227, 96
    %v2229 = vpop.permute.xlu0 %2228
    %v2231 = vmul.f32 %v1727, %v2229
    %v2233 = vrot.slane %v2231, 2
    %v2235 = vmul.f32 %v2216, %v2233
    %v2237 = vrot.slane %v2235, 5
    %v2239 = vsub.f32 %v1727, %v2237
    %v2240 = vlaneseq
    %v2241 = vshrl.u32 %v2240, 7
    %v2242 = vsub.s32 2, %v2241
    %v2243 = vrot.slane %v2231, %v2242
    %v2244 = vmul.f32 %v2034, %v2243
    %v2245 = vmul.f32 %v2035, %v2243
    %v2246 = vmul.f32 %v2036, %v2243
    %v2247 = vmul.f32 %v2037, %v2243
    %v2248 = vmul.f32 %v2038, %v2243
    %v2249 = vmul.f32 %v2039, %v2243
    %v2250 = vmul.f32 %v2040, %v2243
    %v2251 = vmul.f32 %v2041, %v2243
    %v2252 = vmul.f32 %v2042, %v2243
    %v2253 = vmul.f32 %v2043, %v2243
    %v2254 = vmul.f32 %v2044, %v2243
    %v2255 = vmul.f32 %v2045, %v2243
    %v2256 = vmul.f32 %v2046, %v2243
    %v2257 = vmul.f32 %v2047, %v2243
    %v2258 = vmul.f32 %v2048, %v2243
    %v2259 = vmul.f32 %v2049, %v2243
    %v2260 = vlaneseq
    %v2261 = vshrl.u32 %v2260, 7
    %v2262 = vsub.s32 3, %v2261
    %v2263 = vrot.slane %v2239, %v2262
    %v2264 = vadd.f32 %v2244, %v2263
    %v2265 = vadd.f32 %v2245, %v2263
    %v2266 = vadd.f32 %v2246, %v2263
    %v2267 = vadd.f32 %v2247, %v2263
    %v2268 = vadd.f32 %v2248, %v2263
    %v2269 = vadd.f32 %v2249, %v2263
    %v2270 = vadd.f32 %v2250, %v2263
    %v2271 = vadd.f32 %v2251, %v2263
    %v2272 = vadd.f32 %v2252, %v2263
    %v2273 = vadd.f32 %v2253, %v2263
    %v2274 = vadd.f32 %v2254, %v2263
    %v2275 = vadd.f32 %v2255, %v2263
    %v2276 = vadd.f32 %v2256, %v2263
    %v2277 = vadd.f32 %v2257, %v2263
    %v2278 = vadd.f32 %v2258, %v2263
    %v2279 = vadd.f32 %v2259, %v2263
    %v2280 = vmax.f32 %v2264, 0.0
    %v2281 = vmax.f32 %v2265, 0.0
    %v2282 = vmax.f32 %v2266, 0.0
    %v2283 = vmax.f32 %v2267, 0.0
    %v2284 = vmax.f32 %v2268, 0.0
    %v2285 = vmax.f32 %v2269, 0.0
    %v2286 = vmax.f32 %v2270, 0.0
    %v2287 = vmax.f32 %v2271, 0.0
    %v2288 = vmax.f32 %v2272, 0.0
    %v2289 = vmax.f32 %v2273, 0.0
    %v2290 = vmax.f32 %v2274, 0.0
    %v2291 = vmax.f32 %v2275, 0.0
    %v2292 = vmax.f32 %v2276, 0.0
    %v2293 = vmax.f32 %v2277, 0.0
    %v2294 = vmax.f32 %v2278, 0.0
    %v2295 = vmax.f32 %v2279, 0.0
    %v2296 = vld [vmem:[%s5] sm:$0xff]
    %s2297 = sld [smem:[#allocation2 + $0x3]]
    %v2298 = vstv %s2297
    %v2300 = vsel %vm311, %v2296, 0
    %v2303 = vsel %vm311, %v2280, 0
    %v2306 = vsel %vm311, %v2281, 0
    %v2309 = vsel %vm311, %v2282, 0
    %v2312 = vsel %vm311, %v2283, 0
    %v2315 = vsel %vm311, %v2284, 0
    %v2318 = vsel %vm311, %v2285, 0
    %v2321 = vsel %vm311, %v2286, 0
    %v2324 = vsel %vm311, %v2287, 0
    %v2327 = vsel %vm311, %v2288, 0
    %v2330 = vsel %vm311, %v2289, 0
    %v2333 = vsel %vm311, %v2290, 0
    %v2336 = vsel %vm311, %v2291, 0
    %v2339 = vsel %vm311, %v2292, 0
    %v2342 = vsel %vm311, %v2293, 0
    %v2345 = vsel %vm311, %v2294, 0
    %v2348 = vsel %vm311, %v2295, 0
    %2350 = vmatprep.subr.mxu0 0.0
    %2351 = vmatpush1.xpose.msra.mxu0 %v2303
    %2352 = vmatprep.subr.mxu0 0.0
    %2353 = vmatpush1.xpose.msra.mxu0 %v2306
    %2354 = vmatprep.subr.mxu0 0.0
    %2355 = vmatpush1.xpose.msra.mxu0 %v2309
    %2356 = vmatprep.subr.mxu0 0.0
    %2357 = vmatpush1.xpose.msra.mxu0 %v2312
    %2358 = vmatprep.subr.mxu0 0.0
    %2359 = vmatpush1.xpose.msra.mxu0 %v2315
    %2360 = vmatprep.subr.mxu0 0.0
    %2361 = vmatpush1.xpose.msra.mxu0 %v2318
    %2362 = vmatprep.subr.mxu0 0.0
    %2363 = vmatpush1.xpose.msra.mxu0 %v2321
    %2364 = vmatprep.subr.mxu0 0.0
    %2365 = vmatpush1.xpose.msra.mxu0 %v2324
    %2366 = vmatprep.subr.mxu0 0.0
    %2367 = vmatpush1.xpose.msra.mxu0 %v2327
    %2368 = vmatprep.subr.mxu0 0.0
    %2369 = vmatpush1.xpose.msra.mxu0 %v2330
    %2370 = vmatprep.subr.mxu0 0.0
    %2371 = vmatpush1.xpose.msra.mxu0 %v2333
    %2372 = vmatprep.subr.mxu0 0.0
    %2373 = vmatpush1.xpose.msra.mxu0 %v2336
    %2374 = vmatprep.subr.mxu0 0.0
    %2375 = vmatpush1.xpose.msra.mxu0 %v2339
    %2376 = vmatprep.subr.mxu0 0.0
    %2377 = vmatpush1.xpose.msra.mxu0 %v2342
    %2378 = vmatprep.subr.mxu0 0.0
    %2379 = vmatpush1.xpose.msra.mxu0 %v2345
    %2380 = vmatprep.subr.mxu0 0.0
    %2381 = vmatpush1.xpose.msra.mxu0 %v2348
    %2382 = vmatprep.subr.mxu0 0.0
    %2383 = vmatpush1.xpose.msra.mxu0 0.0
    %2384 = vmatprep.subr.mxu0 0.0
    %2385 = vmatpush1.xpose.msra.mxu0 0.0
    %2386 = vmatprep.subr.mxu0 0.0
    %2387 = vmatpush1.xpose.msra.mxu0 0.0
    %2388 = vmatprep.subr.mxu0 0.0
    %2389 = vmatpush1.xpose.msra.mxu0 0.0
    %2390 = vmatprep.subr.mxu0 0.0
    %2391 = vmatpush1.xpose.msra.mxu0 0.0
    %2392 = vmatprep.subr.mxu0 0.0
    %2393 = vmatpush1.xpose.msra.mxu0 0.0
    %2394 = vmatprep.subr.mxu0 0.0
    %2395 = vmatpush1.xpose.msra.mxu0 0.0
    %2396 = vmatprep.subr.mxu0 0.0
    %2397 = vmatpush1.xpose.msra.mxu0 0.0
    %2398 = vmatprep.subr.mxu0 0.0
    %2399 = vmatpush1.xpose.msra.mxu0 0.0
    %2400 = vmatprep.subr.mxu0 0.0
    %2401 = vmatpush1.xpose.msra.mxu0 0.0
    %2402 = vmatprep.subr.mxu0 0.0
    %2403 = vmatpush1.xpose.msra.mxu0 0.0
    %2404 = vmatprep.subr.mxu0 0.0
    %2405 = vmatpush1.xpose.msra.mxu0 0.0
    %2406 = vmatprep.subr.mxu0 0.0
    %2407 = vmatpush1.xpose.msra.mxu0 0.0
    %2408 = vmatprep.subr.mxu0 0.0
    %2409 = vmatpush1.xpose.msra.mxu0 0.0
    %2410 = vmatprep.subr.mxu0 0.0
    %2411 = vmatpush1.xpose.msra.mxu0 0.0
    %2412 = vmatprep.subr.mxu0 0.0
    %2413 = vmatpush1.xpose.msra.mxu0 0.0
    %2414 = vmatprep.mubr.f32.mxu0 0.0
    %2415 = vmatmul.mubr.f32.gmra.mrb[0].mxu0 %v2300
    %v2416 = vpop.f32.mrb[0].mxu0
    %v2417 = vadd.f32 %v2298, %v2416
    %v2418 = vpop.f32.mrb[0].mxu0
    %2419 = vdwg.mxu0
    %2420 = vst [vmem:[#allocation7] sm:$0xff] %v2417
    // Predicated region
    $region34: #{tpu_custom_call.1} parent=1 // pred_check
      _
    $region35: #{tpu_custom_call.1} parent=1 // pred_check_branch
      %2422 = sbr.rel (0) target = $region37
    $region36: #{tpu_custom_call.1} parent=1 // pred_region
      %s2424 = ssub.s32 128, 128
      %2425 = vsyncadd [#allocation4], %s2424
      %s2427 = sshll.u32 [#allocation7], 4
      %s2428 = int_to_ptr.vmem [resolvable:$true] %s2427
      %2430 = dma.vmem_to_hbm [thread:$0]  %s2428, 128, %s6, [#allocation4]
    $region37: #{tpu_custom_call.1} parent=1 // pred_fallthru
      _
    // Predicated region
    $region38: #{tpu_custom_call.1} parent=1 // pred_check
      _
    $region39: #{tpu_custom_call.1} parent=1 // pred_check_branch
      %2432 = sbr.rel (0) target = $region41
    $region40: #{tpu_custom_call.1} parent=1 // pred_region
      %2433 = dma.done [#allocation4], 128
    $region41: #{tpu_custom_call.1} parent=1 // pred_fallthru
      _
    %2434 = vsyncpa [#allocation3], 1
    %2435 = vsyncpa [#allocation4], 1
    %2436 = vsyncpa [#allocation5], 1

</llo_original>
